<compile_context>
chip_gen: v7x
topology: tpu7x:2x2x1
jax: 0.10.0
libtpu: 0.0.40
codegen_flags: <defaults>
</compile_context>

<pallas_src>
import functools
import math

import jax
import jax.numpy as jnp
from jax import lax
from jax.experimental import pallas as pl
from jax.experimental.pallas import tpu as pltpu


def _bert_attention_kernel(x_ref, mask_ref, wqkv_ref, bqkv_ref, wo_ref, bo_ref,
                           gamma_ref, beta_ref, out_ref, scores_ref,
                           qkv_scr, ctx_scr, *, num_heads, head_dim, eps):
    """One grid step == one batch element.

    x_ref:      (S, C)        input activations (also the residual)
    mask_ref:   (1, S)        additive attention mask over keys (0 / -1e4)
    wqkv_ref:   (3C, C)       fused q|k|v weight, torch (out,in) layout, q pre-scaled
    bqkv_ref:   (3C, 1)       fused q|k|v bias (q part pre-scaled)
    wo_ref:     (C, C)        output projection weight, torch (out,in) layout
    bo_ref:     (1, C)        output projection bias
    gamma_ref:  (1, C)        LayerNorm weight
    beta_ref:   (1, C)        LayerNorm bias
    out_ref:    (S, C)        attention_output
    scores_ref: (H, S, S)     pre-softmax attention scores (scaled + masked)
    qkv_scr:    (3C, S) f32   transposed q|k|v activations (heads on sub-lanes)
    ctx_scr:    (H, Dh, S) f32 per-head transposed context
    """
    f32 = jnp.float32
    H, Dh = num_heads, head_dim
    S, C = x_ref.shape

    nn = (((1,), (0,)), ((), ()))   # standard (M,K) x (K,N)
    nt = (((1,), (1,)), ((), ()))   # rhs transposed: contract last dims of both

    x = x_ref[...]                                   # (S, C)
    mask = mask_ref[...].astype(f32)                 # (1, S), broadcasts over queries

    # ---- fused QKV projection: one wide MXU matmul -> (3C, S) ----
    qkv_t = lax.dot_general(wqkv_ref[...], x, nt, preferred_element_type=f32)
    qkv_scr[...] = qkv_t + bqkv_ref[...].astype(f32)  # single fused bias add

    ones_row = jnp.ones((1, S), f32)                 # hoisted (row-sum matmul operand)

    def head_body(h, carry):
        off = h * Dh
        q_t = qkv_scr[pl.ds(pl.multiple_of(off, Dh), Dh), :]            # (Dh, S)
        k_t = qkv_scr[pl.ds(pl.multiple_of(C + off, Dh), Dh), :]        # (Dh, S)
        v_t = qkv_scr[pl.ds(pl.multiple_of(2 * C + off, Dh), Dh), :]    # (Dh, S)

        # scaled scores + mask (1/sqrt(Dh) already folded into the q weights)
        s = lax.dot_general(q_t.T, k_t, nn, preferred_element_type=f32) + mask
        scores_ref[h] = s.astype(scores_ref.dtype)

        # softmax with delayed normalization (dropout == identity in eval)
        m = jnp.max(s, axis=-1, keepdims=True)                          # (S, 1)
        e = jnp.exp(s - m)                                              # (S, S)
        # per-query row-sums in lane orientation via a 1-row matmul
        l = lax.dot_general(ones_row, e, nt, preferred_element_type=f32)  # (1, S)
        ctx_t = lax.dot_general(v_t, e, nt, preferred_element_type=f32)   # (Dh, S)
        ctx_scr[h] = ctx_t * pl.reciprocal(l, approx=True)
        return carry

    lax.fori_loop(0, H, head_body, 0)

    # ---- single full-depth output projection + residual + LayerNorm ----
    ctx_t_full = jnp.concatenate([ctx_scr[i] for i in range(H)], axis=0)  # (C, S)
    ctx = ctx_t_full.T                                                    # (S, C)
    y = lax.dot_general(ctx, wo_ref[...], nt, preferred_element_type=f32)
    y = y + bo_ref[...].astype(f32) + x.astype(f32)                       # (S, C)

    mean = jnp.mean(y, axis=-1, keepdims=True)
    var = jnp.mean((y - mean) ** 2, axis=-1, keepdims=True)
    norm = (y - mean) * lax.rsqrt(var + eps)
    out = gamma_ref[...].astype(f32) * norm + beta_ref[...].astype(f32)
    out_ref[...] = out.astype(out_ref.dtype)


def bert_attention(hidden_states, attention_mask, in_proj_weight, in_proj_bias,
                   out_weight, out_bias, ln_gamma, ln_beta, *, num_heads,
                   eps=1e-12):
    """Fused BertAttention forward.

    hidden_states:  (B, S, C)
    attention_mask: (B, 1, 1, S) or (B, S)   additive mask (broadcast over queries)
    in_proj_weight: (3C, C)  torch Linear layout (out, in), q|k|v stacked on dim 0
    in_proj_bias:   (3C,)
    out_weight:     (C, C)   torch Linear layout (out, in)
    out_bias, ln_gamma, ln_beta: (C,)
    Returns (attention_output (B,S,C), attention_scores (B,H,S,S)).
    Dropout layers are the identity (eval mode).
    # TODO(synk): training-mode dropout (pltpu.prng_random_bits) not implemented.
    # TODO(synk): structured (B,H,S,S) attention masks not supported.
    # TODO(synk): v7x could add a parallel query-tile grid axis when B is small.
    """
    B, S, C = hidden_states.shape
    H = num_heads
    assert C % H == 0, "hidden size must be a multiple of num_heads"
    Dh = C // H
    assert Dh % 8 == 0, "head size must be a multiple of 8 for sub-lane slicing"
    assert attention_mask.size == B * S, (
        "only key-broadcast masks of shape (B,1,1,S) or (B,S) are supported")
    scale = 1.0 / math.sqrt(Dh)
    dtype = hidden_states.dtype

    # --- parameter re-layout (plain JAX, once per call) ---
    mask2 = attention_mask.reshape(B, 1, S).astype(jnp.float32)
    # fold the 1/sqrt(Dh) score scaling into the q projection (zero in-kernel cost)
    scale_vec = jnp.concatenate([
        jnp.full((C,), scale, dtype=in_proj_weight.dtype),
        jnp.ones((2 * C,), dtype=in_proj_weight.dtype)])
    wqkv = in_proj_weight * scale_vec[:, None]           # (3C, C)
    bqkv = (in_proj_bias * scale_vec).reshape(3 * C, 1)  # (3C, 1)
    bo2 = out_bias.reshape(1, C)
    g2 = ln_gamma.reshape(1, C)
    be2 = ln_beta.reshape(1, C)

    kernel = functools.partial(_bert_attention_kernel, num_heads=H, head_dim=Dh,
                               eps=eps)

    # VMEM budget: weights + double-buffered blocks + scratch, with headroom.
    isz = jnp.dtype(dtype).itemsize
    weight_bytes = sum(int(a.size) * a.dtype.itemsize
                       for a in (wqkv, bqkv, out_weight, bo2, g2, be2))
    block_bytes = (2 * S * C) * isz + 4 * S + 4 * H * S * S
    scratch_bytes = 4 * (3 * C * S + H * Dh * S)
    est = 2 * (weight_bytes + block_bytes) + scratch_bytes
    vmem_limit = int(min(128 * 1024 * 1024, max(32 * 1024 * 1024, 2 * est)))

    out, scores = pl.pallas_call(
        kernel,
        out_shape=(
            jax.ShapeDtypeStruct((B, S, C), dtype),
            jax.ShapeDtypeStruct((B, H, S, S), jnp.float32),
        ),
        grid_spec=pltpu.PrefetchScalarGridSpec(
            num_scalar_prefetch=0,
            grid=(B,),
            in_specs=[
                pl.BlockSpec((None, S, C), lambda b: (b, 0, 0)),      # x / residual
                pl.BlockSpec((None, 1, S), lambda b: (b, 0, 0)),      # additive mask
                pl.BlockSpec((3 * C, C), lambda b: (0, 0)),           # fused QKV weight (resident)
                pl.BlockSpec((3 * C, 1), lambda b: (0, 0)),           # fused QKV bias
                pl.BlockSpec((C, C), lambda b: (0, 0)),               # out-proj weight (resident)
                pl.BlockSpec((1, C), lambda b: (0, 0)),               # out-proj bias
                pl.BlockSpec((1, C), lambda b: (0, 0)),               # LN gamma
                pl.BlockSpec((1, C), lambda b: (0, 0)),               # LN beta
            ],
            out_specs=(
                pl.BlockSpec((None, S, C), lambda b: (b, 0, 0)),          # attention_output
                pl.BlockSpec((None, H, S, S), lambda b: (b, 0, 0, 0)),    # attention scores
            ),
            scratch_shapes=[
                pltpu.VMEM((3 * C, S), jnp.float32),   # transposed q|k|v activations
                pltpu.VMEM((H, Dh, S), jnp.float32),   # per-head transposed context
            ],
        ),
        compiler_params=pltpu.CompilerParams(
            dimension_semantics=("parallel",),
            vmem_limit_bytes=vmem_limit),
    )(hidden_states, mask2, wqkv, bqkv, out_weight, bo2, g2, be2)

    return out, scores


def bert_attention_ref(x, mask, in_proj_w, in_proj_b, wo, bo, gamma, beta,
                       num_heads, eps=1e-12):
    """Pure-JAX reference matching the PyTorch module."""
    B, S, C = x.shape
    H = num_heads
    Dh = C // H
    hp = lax.Precision.HIGHEST
    qkv = jnp.einsum("bsc,oc->bso", x, in_proj_w, precision=hp) + in_proj_b
    q, k, v = jnp.split(qkv, 3, axis=-1)
    heads = lambda t: t.reshape(B, S, H, Dh).transpose(0, 2, 1, 3)
    qh, kh, vh = heads(q), heads(k), heads(v)
    scores = jnp.einsum("bhsd,bhtd->bhst", qh, kh, precision=hp) / math.sqrt(Dh)
    scores = scores + mask                      # mask (B,1,1,S) broadcasts
    probs = jax.nn.softmax(scores, axis=-1)
    ctx = jnp.einsum("bhst,bhtd->bhsd", probs, vh, precision=hp)
    ctx = ctx.transpose(0, 2, 1, 3).reshape(B, S, C)
    y = jnp.einsum("bsc,oc->bso", ctx, wo, precision=hp) + bo + x
    mean = y.mean(-1, keepdims=True)
    var = ((y - mean) ** 2).mean(-1, keepdims=True)
    out = gamma * (y - mean) / jnp.sqrt(var + eps) + beta
    return out, scores


if __name__ == "__main__":
    # small config: batch=2, seq=16, hidden=64, heads=4 (head_size=16)
    B, S, C, H = 2, 16, 64, 4
    Dh = C // H
    key = jax.random.PRNGKey(0)
    k1, k2, k3, k4, k5 = jax.random.split(key, 5)

    hidden_states = jax.random.normal(k1, (B, S, C), dtype=jnp.float32)

    # additive attention mask: second example has 4 padded key positions
    lengths = jnp.array([S, S - 4])
    key_pos = jnp.arange(S)
    attention_mask = jnp.where(key_pos[None, :] < lengths[:, None], 0.0, -1e4)
    attention_mask = attention_mask[:, None, None, :].astype(jnp.float32)  # (B,1,1,S)

    # parameters (deterministic; in_proj init scale matches the module)
    in_proj_weight = (Dh ** -0.5) * jax.random.normal(k2, (3 * C, C), dtype=jnp.float32)
    in_proj_bias = 0.02 * jax.random.normal(k3, (3 * C,), dtype=jnp.float32)
    out_weight = 0.05 * jax.random.normal(k4, (C, C), dtype=jnp.float32)
    out_bias = 0.02 * jax.random.normal(k5, (C,), dtype=jnp.float32)
    ln_gamma = jnp.ones((C,), dtype=jnp.float32)
    ln_beta = jnp.zeros((C,), dtype=jnp.float32)

    out, scores = bert_attention(hidden_states, attention_mask, in_proj_weight,
                                 in_proj_bias, out_weight, out_bias, ln_gamma,
                                 ln_beta, num_heads=H)
    out, scores = jax.block_until_ready((out, scores))

    ref_out, ref_scores = bert_attention_ref(hidden_states, attention_mask,
                                             in_proj_weight, in_proj_bias,
                                             out_weight, out_bias, ln_gamma,
                                             ln_beta, num_heads=H)

    assert out.shape == (B, S, C)
    assert scores.shape == (B, H, S, S)
    assert jnp.allclose(out, ref_out, atol=2e-2, rtol=2e-2)
    assert jnp.allclose(scores, ref_scores, atol=2e-2, rtol=2e-2)
    print("KERNEL_OK")
</pallas_src>

<mosaic_0001>
module attributes {stable_mosaic.version = 11 : i64} {
  func.func @_bert_attention_kernel(%arg0: i32, %arg1: memref<1x16x64xf32, #tpu.memory_space<vmem>>, %arg2: memref<1x1x16xf32, #tpu.memory_space<vmem>>, %arg3: memref<192x64xf32, #tpu.memory_space<vmem>>, %arg4: memref<192x1xf32, #tpu.memory_space<vmem>>, %arg5: memref<64x64xf32, #tpu.memory_space<vmem>>, %arg6: memref<1x64xf32, #tpu.memory_space<vmem>>, %arg7: memref<1x64xf32, #tpu.memory_space<vmem>>, %arg8: memref<1x64xf32, #tpu.memory_space<vmem>>, %arg9: memref<1x16x64xf32, #tpu.memory_space<vmem>>, %arg10: memref<1x4x16x16xf32, #tpu.memory_space<vmem>>, %arg11: memref<192x16xf32, #tpu.memory_space<vmem>>, %arg12: memref<4x16x16xf32, #tpu.memory_space<vmem>>) attributes {dimension_semantics = [#tpu.dimension_semantics<parallel>], iteration_bounds = array<i64: 2>, scalar_prefetch = 0 : i64, scratch_operands = 2 : i64, tpu.core_type = #tpu.core_type<tc>, window_params = [{transform_indices = @transform_0, window_bounds = array<i64: 1, 16, 64>}, {transform_indices = @transform_1, window_bounds = array<i64: 1, 1, 16>}, {pipeline_mode = #tpu.pipeline_mode<synchronous>, transform_indices = @transform_2, window_bounds = array<i64: 192, 64>}, {pipeline_mode = #tpu.pipeline_mode<synchronous>, transform_indices = @transform_3, window_bounds = array<i64: 192, 1>}, {pipeline_mode = #tpu.pipeline_mode<synchronous>, transform_indices = @transform_4, window_bounds = array<i64: 64, 64>}, {pipeline_mode = #tpu.pipeline_mode<synchronous>, transform_indices = @transform_5, window_bounds = array<i64: 1, 64>}, {pipeline_mode = #tpu.pipeline_mode<synchronous>, transform_indices = @transform_6, window_bounds = array<i64: 1, 64>}, {pipeline_mode = #tpu.pipeline_mode<synchronous>, transform_indices = @transform_7, window_bounds = array<i64: 1, 64>}, {transform_indices = @transform_8, window_bounds = array<i64: 1, 16, 64>}, {transform_indices = @transform_9, window_bounds = array<i64: 1, 4, 16, 16>}]} {
    %c0 = arith.constant 0 : index
    %c0_0 = arith.constant 0 : index
    %c0_1 = arith.constant 0 : index
    %0 = vector.load %arg1[%c0, %c0_0, %c0_1] : memref<1x16x64xf32, #tpu.memory_space<vmem>>, vector<1x16x64xf32>
    %1 = vector.shape_cast %0 : vector<1x16x64xf32> to vector<16x64xf32>
    %c0_2 = arith.constant 0 : index
    %c0_3 = arith.constant 0 : index
    %c0_4 = arith.constant 0 : index
    %2 = vector.load %arg2[%c0_2, %c0_3, %c0_4] : memref<1x1x16xf32, #tpu.memory_space<vmem>>, vector<1x1x16xf32>
    %3 = vector.shape_cast %2 : vector<1x1x16xf32> to vector<1x16xf32>
    %c0_5 = arith.constant 0 : index
    %c0_6 = arith.constant 0 : index
    %4 = vector.load %arg3[%c0_5, %c0_6] : memref<192x64xf32, #tpu.memory_space<vmem>>, vector<192x64xf32>
    %cst = arith.constant dense<0.000000e+00> : vector<192x16xf32>
    %5 = tpu.matmul %4, %1, %cst {dimension_numbers = #tpu.dot_dimension_numbers<[1], [1], [0], [0], [0, 0, 1, 0], [], []>} : vector<192x64xf32>, vector<16x64xf32>, vector<192x16xf32> -> vector<192x16xf32>
    %c0_7 = arith.constant 0 : index
    %c0_8 = arith.constant 0 : index
    %6 = vector.load %arg4[%c0_7, %c0_8] : memref<192x1xf32, #tpu.memory_space<vmem>>, vector<192x1xf32>
    %7 = vector.broadcast %6 : vector<192x1xf32> to vector<192x16xf32>
    %8 = arith.addf %5, %7 : vector<192x16xf32>
    %c0_9 = arith.constant 0 : index
    %c0_10 = arith.constant 0 : index
    %9 = vector.load %arg11[%c0_9, %c0_10] : memref<192x16xf32, #tpu.memory_space<vmem>>, vector<192x16xf32>
    tpu.vector_store %arg11[%c0_9, %c0_10], %8 {strides = array<i32>} : memref<192x16xf32, #tpu.memory_space<vmem>>, vector<192x16xf32>,
    %cst_11 = arith.constant 1.000000e+00 : f32
    %10 = vector.broadcast %cst_11 : f32 to vector<1x16xf32>
    %c0_i32 = arith.constant 0 : i32
    %c4_i32 = arith.constant 4 : i32
    %11 = arith.addi %c0_i32, %c4_i32 : i32
    %c1_i32 = arith.constant 1 : i32
    scf.for %arg13 = %c0_i32 to %11 step %c1_i32  : i32 {
      %c16_i32 = arith.constant 16 : i32
      %55 = arith.muli %arg13, %c16_i32 : i32
      %56 = tpu.assume_multiple %55, 16 : i32
      %57 = arith.index_cast %56 : i32 to index
      %c0_39 = arith.constant 0 : index
      %58 = vector.load %arg11[%57, %c0_39] : memref<192x16xf32, #tpu.memory_space<vmem>>, vector<16x16xf32>
      %c64_i32 = arith.constant 64 : i32
      %59 = arith.addi %c64_i32, %55 : i32
      %60 = tpu.assume_multiple %59, 16 : i32
      %61 = arith.index_cast %60 : i32 to index
      %c0_40 = arith.constant 0 : index
      %62 = vector.load %arg11[%61, %c0_40] : memref<192x16xf32, #tpu.memory_space<vmem>>, vector<16x16xf32>
      %c128_i32 = arith.constant 128 : i32
      %63 = arith.addi %c128_i32, %55 : i32
      %64 = tpu.assume_multiple %63, 16 : i32
      %65 = arith.index_cast %64 : i32 to index
      %c0_41 = arith.constant 0 : index
      %66 = vector.load %arg11[%65, %c0_41] : memref<192x16xf32, #tpu.memory_space<vmem>>, vector<16x16xf32>
      %67 = tpu.transpose %58, [1, 0] : vector<16x16xf32> -> vector<16x16xf32>
      %cst_42 = arith.constant dense<0.000000e+00> : vector<16x16xf32>
      %68 = tpu.matmul %67, %62, %cst_42 {dimension_numbers = #tpu.dot_dimension_numbers<[1], [0], [0], [1], [0, 0, 1, 1], [], []>} : vector<16x16xf32>, vector<16x16xf32>, vector<16x16xf32> -> vector<16x16xf32>
      %69 = vector.broadcast %3 : vector<1x16xf32> to vector<16x16xf32>
      %70 = arith.addf %68, %69 : vector<16x16xf32>
      %c0_43 = arith.constant 0 : index
      %71 = arith.index_cast %arg13 : i32 to index
      %c0_44 = arith.constant 0 : index
      %c0_45 = arith.constant 0 : index
      %72 = vector.load %arg10[%c0_43, %71, %c0_44, %c0_45] : memref<1x4x16x16xf32, #tpu.memory_space<vmem>>, vector<1x1x16x16xf32>
      %73 = vector.shape_cast %72 : vector<1x1x16x16xf32> to vector<16x16xf32>
      %74 = vector.shape_cast %70 : vector<16x16xf32> to vector<1x1x16x16xf32>
      tpu.vector_store %arg10[%c0_43, %71, %c0_44, %c0_45], %74 {strides = array<i32>} : memref<1x4x16x16xf32, #tpu.memory_space<vmem>>, vector<1x1x16x16xf32>,
      %cst_46 = arith.constant dense<0xFF800000> : vector<16xf32>
      %75 = vector.multi_reduction <maximumf>, %70, %cst_46 [1] : vector<16x16xf32> to vector<16xf32>
      %76 = vector.shape_cast %75 : vector<16xf32> to vector<16x1xf32>
      %77 = vector.broadcast %76 : vector<16x1xf32> to vector<16x16xf32>
      %78 = arith.subf %70, %77 : vector<16x16xf32>
      %79 = math.exp %78 : vector<16x16xf32>
      %cst_47 = arith.constant dense<0.000000e+00> : vector<1x16xf32>
      %80 = tpu.matmul %10, %79, %cst_47 {dimension_numbers = #tpu.dot_dimension_numbers<[1], [1], [0], [0], [0, 0, 1, 0], [], []>} : vector<1x16xf32>, vector<16x16xf32>, vector<1x16xf32> -> vector<1x16xf32>
      %cst_48 = arith.constant dense<0.000000e+00> : vector<16x16xf32>
      %81 = tpu.matmul %66, %79, %cst_48 {dimension_numbers = #tpu.dot_dimension_numbers<[1], [1], [0], [0], [0, 0, 1, 0], [], []>} : vector<16x16xf32>, vector<16x16xf32>, vector<16x16xf32> -> vector<16x16xf32>
      %82 = tpu.reciprocal %80 {approx = true} : vector<1x16xf32> -> vector<1x16xf32>
      %83 = vector.broadcast %82 : vector<1x16xf32> to vector<16x16xf32>
      %84 = arith.mulf %81, %83 : vector<16x16xf32>
      %85 = arith.index_cast %arg13 : i32 to index
      %c0_49 = arith.constant 0 : index
      %c0_50 = arith.constant 0 : index
      %86 = vector.load %arg12[%85, %c0_49, %c0_50] : memref<4x16x16xf32, #tpu.memory_space<vmem>>, vector<1x16x16xf32>
      %87 = vector.shape_cast %86 : vector<1x16x16xf32> to vector<16x16xf32>
      %88 = vector.shape_cast %84 : vector<16x16xf32> to vector<1x16x16xf32>
      tpu.vector_store %arg12[%85, %c0_49, %c0_50], %88 {strides = array<i32>} : memref<4x16x16xf32, #tpu.memory_space<vmem>>, vector<1x16x16xf32>,
    }
    %c4_i32_12 = arith.constant 4 : i32
    %c0_13 = arith.constant 0 : index
    %c0_14 = arith.constant 0 : index
    %c0_15 = arith.constant 0 : index
    %12 = vector.load %arg12[%c0_13, %c0_14, %c0_15] : memref<4x16x16xf32, #tpu.memory_space<vmem>>, vector<1x16x16xf32>
    %13 = vector.shape_cast %12 : vector<1x16x16xf32> to vector<16x16xf32>
    %c1 = arith.constant 1 : index
    %c0_16 = arith.constant 0 : index
    %c0_17 = arith.constant 0 : index
    %14 = vector.load %arg12[%c1, %c0_16, %c0_17] : memref<4x16x16xf32, #tpu.memory_space<vmem>>, vector<1x16x16xf32>
    %15 = vector.shape_cast %14 : vector<1x16x16xf32> to vector<16x16xf32>
    %c2 = arith.constant 2 : index
    %c0_18 = arith.constant 0 : index
    %c0_19 = arith.constant 0 : index
    %16 = vector.load %arg12[%c2, %c0_18, %c0_19] : memref<4x16x16xf32, #tpu.memory_space<vmem>>, vector<1x16x16xf32>
    %17 = vector.shape_cast %16 : vector<1x16x16xf32> to vector<16x16xf32>
    %c3 = arith.constant 3 : index
    %c0_20 = arith.constant 0 : index
    %c0_21 = arith.constant 0 : index
    %18 = vector.load %arg12[%c3, %c0_20, %c0_21] : memref<4x16x16xf32, #tpu.memory_space<vmem>>, vector<1x16x16xf32>
    %19 = vector.shape_cast %18 : vector<1x16x16xf32> to vector<16x16xf32>
    %20 = tpu.concatenate %13, %15, %17, %19 in 0 : vector<16x16xf32>, vector<16x16xf32>, vector<16x16xf32>, vector<16x16xf32> -> vector<64x16xf32>
    %21 = tpu.transpose %20, [1, 0] : vector<64x16xf32> -> vector<16x64xf32>
    %c0_22 = arith.constant 0 : index
    %c0_23 = arith.constant 0 : index
    %22 = vector.load %arg5[%c0_22, %c0_23] : memref<64x64xf32, #tpu.memory_space<vmem>>, vector<64x64xf32>
    %cst_24 = arith.constant dense<0.000000e+00> : vector<16x64xf32>
    %23 = tpu.matmul %21, %22, %cst_24 {dimension_numbers = #tpu.dot_dimension_numbers<[1], [1], [0], [0], [0, 0, 1, 0], [], []>} : vector<16x64xf32>, vector<64x64xf32>, vector<16x64xf32> -> vector<16x64xf32>
    %c0_25 = arith.constant 0 : index
    %c0_26 = arith.constant 0 : index
    %24 = vector.load %arg6[%c0_25, %c0_26] : memref<1x64xf32, #tpu.memory_space<vmem>>, vector<1x64xf32>
    %25 = vector.broadcast %24 : vector<1x64xf32> to vector<16x64xf32>
    %26 = arith.addf %23, %25 : vector<16x64xf32>
    %27 = arith.addf %26, %1 : vector<16x64xf32>
    %cst_27 = arith.constant dense<0.000000e+00> : vector<16xf32>
    %28 = vector.multi_reduction <add>, %27, %cst_27 [1] : vector<16x64xf32> to vector<16xf32>
    %29 = vector.shape_cast %28 : vector<16xf32> to vector<16x1xf32>
    %cst_28 = arith.constant 6.400000e+01 : f32
    %30 = vector.broadcast %cst_28 : f32 to vector<16x1xf32>
    %31 = arith.divf %29, %30 : vector<16x1xf32>
    %32 = vector.broadcast %31 : vector<16x1xf32> to vector<16x64xf32>
    %33 = arith.subf %27, %32 : vector<16x64xf32>
    %34 = arith.mulf %33, %33 : vector<16x64xf32>
    %cst_29 = arith.constant dense<0.000000e+00> : vector<16xf32>
    %35 = vector.multi_reduction <add>, %34, %cst_29 [1] : vector<16x64xf32> to vector<16xf32>
    %36 = vector.shape_cast %35 : vector<16xf32> to vector<16x1xf32>
    %cst_30 = arith.constant 6.400000e+01 : f32
    %37 = vector.broadcast %cst_30 : f32 to vector<16x1xf32>
    %38 = arith.divf %36, %37 : vector<16x1xf32>
    %39 = vector.broadcast %31 : vector<16x1xf32> to vector<16x64xf32>
    %40 = arith.subf %27, %39 : vector<16x64xf32>
    %cst_31 = arith.constant 9.99999996E-13 : f32
    %41 = vector.broadcast %cst_31 : f32 to vector<16x1xf32>
    %42 = arith.addf %38, %41 : vector<16x1xf32>
    %43 = math.rsqrt %42 : vector<16x1xf32>
    %44 = vector.broadcast %43 : vector<16x1xf32> to vector<16x64xf32>
    %45 = arith.mulf %40, %44 : vector<16x64xf32>
    %c0_32 = arith.constant 0 : index
    %c0_33 = arith.constant 0 : index
    %46 = vector.load %arg7[%c0_32, %c0_33] : memref<1x64xf32, #tpu.memory_space<vmem>>, vector<1x64xf32>
    %47 = vector.broadcast %46 : vector<1x64xf32> to vector<16x64xf32>
    %48 = arith.mulf %47, %45 : vector<16x64xf32>
    %c0_34 = arith.constant 0 : index
    %c0_35 = arith.constant 0 : index
    %49 = vector.load %arg8[%c0_34, %c0_35] : memref<1x64xf32, #tpu.memory_space<vmem>>, vector<1x64xf32>
    %50 = vector.broadcast %49 : vector<1x64xf32> to vector<16x64xf32>
    %51 = arith.addf %48, %50 : vector<16x64xf32>
    %c0_36 = arith.constant 0 : index
    %c0_37 = arith.constant 0 : index
    %c0_38 = arith.constant 0 : index
    %52 = vector.load %arg9[%c0_36, %c0_37, %c0_38] : memref<1x16x64xf32, #tpu.memory_space<vmem>>, vector<1x16x64xf32>
    %53 = vector.shape_cast %52 : vector<1x16x64xf32> to vector<16x64xf32>
    %54 = vector.shape_cast %51 : vector<16x64xf32> to vector<1x16x64xf32>
    tpu.vector_store %arg9[%c0_36, %c0_37, %c0_38], %54 {strides = array<i32>} : memref<1x16x64xf32, #tpu.memory_space<vmem>>, vector<1x16x64xf32>,
    return
  }
  func.func @transform_0(%arg0: i32) -> (i32, i32, i32) {
    %c0_i32 = arith.constant 0 : i32
    %c0_i32_0 = arith.constant 0 : i32
    %c0_i32_1 = arith.constant 0 : i32
    return %arg0, %c0_i32, %c0_i32_0 : i32, i32, i32
  }
  func.func @transform_1(%arg0: i32) -> (i32, i32, i32) {
    %c0_i32 = arith.constant 0 : i32
    %c0_i32_0 = arith.constant 0 : i32
    %c0_i32_1 = arith.constant 0 : i32
    return %arg0, %c0_i32, %c0_i32_0 : i32, i32, i32
  }
  func.func @transform_2(%arg0: i32) -> (i32, i32) {
    %c0_i32 = arith.constant 0 : i32
    %c0_i32_0 = arith.constant 0 : i32
    %c0_i32_1 = arith.constant 0 : i32
    return %c0_i32, %c0_i32_0 : i32, i32
  }
  func.func @transform_3(%arg0: i32) -> (i32, i32) {
    %c0_i32 = arith.constant 0 : i32
    %c0_i32_0 = arith.constant 0 : i32
    %c0_i32_1 = arith.constant 0 : i32
    return %c0_i32, %c0_i32_0 : i32, i32
  }
  func.func @transform_4(%arg0: i32) -> (i32, i32) {
    %c0_i32 = arith.constant 0 : i32
    %c0_i32_0 = arith.constant 0 : i32
    %c0_i32_1 = arith.constant 0 : i32
    return %c0_i32, %c0_i32_0 : i32, i32
  }
  func.func @transform_5(%arg0: i32) -> (i32, i32) {
    %c0_i32 = arith.constant 0 : i32
    %c0_i32_0 = arith.constant 0 : i32
    %c0_i32_1 = arith.constant 0 : i32
    return %c0_i32, %c0_i32_0 : i32, i32
  }
  func.func @transform_6(%arg0: i32) -> (i32, i32) {
    %c0_i32 = arith.constant 0 : i32
    %c0_i32_0 = arith.constant 0 : i32
    %c0_i32_1 = arith.constant 0 : i32
    return %c0_i32, %c0_i32_0 : i32, i32
  }
  func.func @transform_7(%arg0: i32) -> (i32, i32) {
    %c0_i32 = arith.constant 0 : i32
    %c0_i32_0 = arith.constant 0 : i32
    %c0_i32_1 = arith.constant 0 : i32
    return %c0_i32, %c0_i32_0 : i32, i32
  }
  func.func @transform_8(%arg0: i32) -> (i32, i32, i32) {
    %c0_i32 = arith.constant 0 : i32
    %c0_i32_0 = arith.constant 0 : i32
    %c0_i32_1 = arith.constant 0 : i32
    return %arg0, %c0_i32, %c0_i32_0 : i32, i32, i32
  }
  func.func @transform_9(%arg0: i32) -> (i32, i32, i32, i32) {
    %c0_i32 = arith.constant 0 : i32
    %c0_i32_0 = arith.constant 0 : i32
    %c0_i32_1 = arith.constant 0 : i32
    %c0_i32_2 = arith.constant 0 : i32
    return %arg0, %c0_i32, %c0_i32_0, %c0_i32_1 : i32, i32, i32, i32
  }
}

</mosaic_0001>

<llo_original>
// kernel: tpu_custom_call.1
$region0: #{tpu_custom_call.1}
  #allocation0 [shape = 'u32[]', space=smem, size = 0x4, offset = 0x4, fixed_abs, tag = 'smem constant byte address 0x4 - core index']
  #allocation1 [shape = 'u32[144,128]{1,0:T(1,128)}', space=vmem, size = 0x12000, scoped, tag = 'internal scratch']
  #allocation2 [shape = 'f32[192,16]{1,0:T(8,128)}', space=vmem, size = 0x18000, scoped, tag = 'scratch operand']
  #allocation3 [shape = 'f32[4,16,16]{2,1,0:T(8,128)}', space=vmem, size = 0x8000, scoped, tag = 'scratch operand']
  %s0 = inlined_call_operand.vmem [shape: f32[2,16,64], index: 0, kind: input, shape index: {}]
  %s1 = inlined_call_operand.vmem [shape: f32[2,1,16], index: 1, kind: input, shape index: {}]
  %s2 = inlined_call_operand.vmem [shape: f32[192,64], index: 2, kind: input, shape index: {}]
  %s3 = inlined_call_operand.vmem [shape: f32[192,1], index: 3, kind: input, shape index: {}]
  %s4 = inlined_call_operand.vmem [shape: f32[64,64], index: 4, kind: input, shape index: {}]
  %s5 = inlined_call_operand.vmem [shape: f32[1,64], index: 5, kind: input, shape index: {}]
  %s6 = inlined_call_operand.vmem [shape: f32[1,64], index: 6, kind: input, shape index: {}]
  %s7 = inlined_call_operand.vmem [shape: f32[1,64], index: 7, kind: input, shape index: {}]
  %s8 = inlined_call_operand.hbm [shape: f32[2,16,64], index: 8, kind: output, shape index: {0}]
  %s9 = inlined_call_operand.hbm [shape: f32[2,4,16,16], index: 9, kind: output, shape index: {1}]
  %10 = xla_tuple %s8, %s9
  %s11 = sld [smem:[#allocation0]]
  $region80: #{tpu_custom_call.1} parent=0
    _
  %s13 = ssub.s32 1, %s11
  %s14 = scalar_select 0, %s13, %s11
  $region1: #{tpu_custom_call.1} parent=0
    #allocation4 [shape = 'u8[16384]{0}', space=vmem, size = 0x4000, scoped, tag = 'output window, operand 0']
    #allocation5 [shape = 's32[2]{0}', space=sflag, size = 0x8, scoped, tag = 'scoped memory for tpu_custom_call.1']
    #allocation6 [shape = 'u8[65536]{0}', space=vmem, size = 0x10000, scoped, tag = 'output window, operand 1']
    #allocation7 [shape = 's32[2]{0}', space=sflag, size = 0x8, scoped, tag = 'scoped memory for tpu_custom_call.1']
    %15 = vsyncpa [#allocation5], 0
    %s16 = scalar_lea.sflag [#allocation5], 1
    %17 = vsyncpa %s16, 0
    %18 = vsyncpa [#allocation7], 0
    %s19 = scalar_lea.sflag [#allocation7], 1
    %20 = vsyncpa %s19, 0
    loop: start=0, step=1, limit=4
    $region2: #{tpu_custom_call.1} parent=1 // loop_pre_header
      _
    $region3: #{tpu_custom_call.1} parent=1 // loop_header
      %s22 = sphi 0, %s26
      %p23 = scmp.ge.s32.totalorder %s22, 4
      %s32 = sphi 0, %s34
      %s35 = sphi 0, %s32
      %s36 = sphi 0, %s35
      %s52 = sphi 0, %s36
      %s58 = sphi 0, %s60
      %s61 = sphi 0, %s58
      %s62 = sphi 0, %s61
      %s78 = sphi 0, %s62
      %s82 = sphi 0, %s82
      %s84 = sphi 0, %s82
      %s85 = sphi 0, %s84
      %s99 = sphi 0, %s85
      %s103 = sphi 0, %s103
      %s105 = sphi 0, %s103
      %s106 = sphi 0, %s105
      %s120 = sphi 0, %s106
      %s124 = sphi 0, %s124
      %s126 = sphi 0, %s124
      %s127 = sphi 0, %s126
      %s141 = sphi 0, %s127
      %s145 = sphi 0, %s145
      %s147 = sphi 0, %s145
      %s148 = sphi 0, %s147
      %s162 = sphi 0, %s148
      %s166 = sphi 0, %s166
      %s168 = sphi 0, %s166
      %s169 = sphi 0, %s168
      %s183 = sphi 0, %s169
      %s187 = sphi 0, %s187
      %s189 = sphi 0, %s187
      %s190 = sphi 0, %s189
      %s204 = sphi 0, %s190
      %s210 = sphi 0, %s212
      %s213 = sphi 0, %s210
      %s214 = sphi 0, %s213
      %s230 = sphi 0, %s214
      %s236 = sphi 0, %s238
      %s239 = sphi 0, %s236
      %s240 = sphi 0, %s239
      %s256 = sphi 0, %s240
    $region4: #{tpu_custom_call.1} parent=1 // loop_header_branch
      %25 = sbr.rel (%p23) target = $region8
    $region5: #{tpu_custom_call.1} parent=1 // loop_body
      %s27 = ssub.s32 %s22, 1
      %s28 = ssub.s32 %s22, 2
      %s29 = sadd.s32 %s22, 1
      %s30 = ssub.s32 %s22, %s29
      %p31 = scmp.eq.s32.totalorder %s30, 0
      %s33 = sadd.s32 %s32, 1
      %s34 = scalar_select %p31, %s32, %s33
      %p37 = pneg %p31
      %p38 = scmp.eq.s32.totalorder %s22, 1
      %p39 = por %p37, %p38
      %p40 = scmp.ne.s32.totalorder %s32, %s35
      %p41 = scmp.eq.s32.totalorder %s22, 0
      %p42 = por %p40, %p41
      %p43 = scmp.ne.s32.totalorder %s32, %s35
      %p44 = scmp.eq.s32.totalorder %s27, 1
      %p45 = por %p43, %p44
      %p46 = scmp.ne.s32.totalorder %s35, %s36
      %p47 = scmp.eq.s32.totalorder %s27, 0
      %p48 = por %p46, %p47
      %p49 = scmp.ne.s32.totalorder %s35, %s36
      %p50 = scmp.eq.s32.totalorder %s28, 1
      %p51 = por %p49, %p50
      %p53 = scmp.ne.s32.totalorder %s36, %s52
      %p54 = scmp.eq.s32.totalorder %s28, 0
      %p55 = por %p53, %p54
      %s56 = ssub.s32 %s22, %s29
      %p57 = scmp.eq.s32.totalorder %s56, 0
      %s59 = sadd.s32 %s58, 1
      %s60 = scalar_select %p57, %s58, %s59
      %p63 = pneg %p57
      %p64 = scmp.eq.s32.totalorder %s22, 1
      %p65 = por %p63, %p64
      %p66 = scmp.ne.s32.totalorder %s58, %s61
      %p67 = scmp.eq.s32.totalorder %s22, 0
      %p68 = por %p66, %p67
      %p69 = scmp.ne.s32.totalorder %s58, %s61
      %p70 = scmp.eq.s32.totalorder %s27, 1
      %p71 = por %p69, %p70
      %p72 = scmp.ne.s32.totalorder %s61, %s62
      %p73 = scmp.eq.s32.totalorder %s27, 0
      %p74 = por %p72, %p73
      %p75 = scmp.ne.s32.totalorder %s61, %s62
      %p76 = scmp.eq.s32.totalorder %s28, 1
      %p77 = por %p75, %p76
      %p79 = scmp.ne.s32.totalorder %s62, %s78
      %p80 = scmp.eq.s32.totalorder %s28, 0
      %p81 = por %p79, %p80
      %s83 = sadd.s32 %s82, 1
      %p86 = scmp.eq.s32.totalorder %s22, 1
      %p87 = scmp.ne.s32.totalorder %s82, %s84
      %p88 = scmp.eq.s32.totalorder %s22, 0
      %p89 = por %p87, %p88
      %p90 = scmp.ne.s32.totalorder %s82, %s84
      %p91 = scmp.eq.s32.totalorder %s27, 1
      %p92 = por %p90, %p91
      %p93 = scmp.ne.s32.totalorder %s84, %s85
      %p94 = scmp.eq.s32.totalorder %s27, 0
      %p95 = por %p93, %p94
      %p96 = scmp.ne.s32.totalorder %s84, %s85
      %p97 = scmp.eq.s32.totalorder %s28, 1
      %p98 = por %p96, %p97
      %p100 = scmp.ne.s32.totalorder %s85, %s99
      %p101 = scmp.eq.s32.totalorder %s28, 0
      %p102 = por %p100, %p101
      %s104 = sadd.s32 %s103, 1
      %p107 = scmp.eq.s32.totalorder %s22, 1
      %p108 = scmp.ne.s32.totalorder %s103, %s105
      %p109 = scmp.eq.s32.totalorder %s22, 0
      %p110 = por %p108, %p109
      %p111 = scmp.ne.s32.totalorder %s103, %s105
      %p112 = scmp.eq.s32.totalorder %s27, 1
      %p113 = por %p111, %p112
      %p114 = scmp.ne.s32.totalorder %s105, %s106
      %p115 = scmp.eq.s32.totalorder %s27, 0
      %p116 = por %p114, %p115
      %p117 = scmp.ne.s32.totalorder %s105, %s106
      %p118 = scmp.eq.s32.totalorder %s28, 1
      %p119 = por %p117, %p118
      %p121 = scmp.ne.s32.totalorder %s106, %s120
      %p122 = scmp.eq.s32.totalorder %s28, 0
      %p123 = por %p121, %p122
      %s125 = sadd.s32 %s124, 1
      %p128 = scmp.eq.s32.totalorder %s22, 1
      %p129 = scmp.ne.s32.totalorder %s124, %s126
      %p130 = scmp.eq.s32.totalorder %s22, 0
      %p131 = por %p129, %p130
      %p132 = scmp.ne.s32.totalorder %s124, %s126
      %p133 = scmp.eq.s32.totalorder %s27, 1
      %p134 = por %p132, %p133
      %p135 = scmp.ne.s32.totalorder %s126, %s127
      %p136 = scmp.eq.s32.totalorder %s27, 0
      %p137 = por %p135, %p136
      %p138 = scmp.ne.s32.totalorder %s126, %s127
      %p139 = scmp.eq.s32.totalorder %s28, 1
      %p140 = por %p138, %p139
      %p142 = scmp.ne.s32.totalorder %s127, %s141
      %p143 = scmp.eq.s32.totalorder %s28, 0
      %p144 = por %p142, %p143
      %s146 = sadd.s32 %s145, 1
      %p149 = scmp.eq.s32.totalorder %s22, 1
      %p150 = scmp.ne.s32.totalorder %s145, %s147
      %p151 = scmp.eq.s32.totalorder %s22, 0
      %p152 = por %p150, %p151
      %p153 = scmp.ne.s32.totalorder %s145, %s147
      %p154 = scmp.eq.s32.totalorder %s27, 1
      %p155 = por %p153, %p154
      %p156 = scmp.ne.s32.totalorder %s147, %s148
      %p157 = scmp.eq.s32.totalorder %s27, 0
      %p158 = por %p156, %p157
      %p159 = scmp.ne.s32.totalorder %s147, %s148
      %p160 = scmp.eq.s32.totalorder %s28, 1
      %p161 = por %p159, %p160
      %p163 = scmp.ne.s32.totalorder %s148, %s162
      %p164 = scmp.eq.s32.totalorder %s28, 0
      %p165 = por %p163, %p164
      %s167 = sadd.s32 %s166, 1
      %p170 = scmp.eq.s32.totalorder %s22, 1
      %p171 = scmp.ne.s32.totalorder %s166, %s168
      %p172 = scmp.eq.s32.totalorder %s22, 0
      %p173 = por %p171, %p172
      %p174 = scmp.ne.s32.totalorder %s166, %s168
      %p175 = scmp.eq.s32.totalorder %s27, 1
      %p176 = por %p174, %p175
      %p177 = scmp.ne.s32.totalorder %s168, %s169
      %p178 = scmp.eq.s32.totalorder %s27, 0
      %p179 = por %p177, %p178
      %p180 = scmp.ne.s32.totalorder %s168, %s169
      %p181 = scmp.eq.s32.totalorder %s28, 1
      %p182 = por %p180, %p181
      %p184 = scmp.ne.s32.totalorder %s169, %s183
      %p185 = scmp.eq.s32.totalorder %s28, 0
      %p186 = por %p184, %p185
      %s188 = sadd.s32 %s187, 1
      %p191 = scmp.eq.s32.totalorder %s22, 1
      %p192 = scmp.ne.s32.totalorder %s187, %s189
      %p193 = scmp.eq.s32.totalorder %s22, 0
      %p194 = por %p192, %p193
      %p195 = scmp.ne.s32.totalorder %s187, %s189
      %p196 = scmp.eq.s32.totalorder %s27, 1
      %p197 = por %p195, %p196
      %p198 = scmp.ne.s32.totalorder %s189, %s190
      %p199 = scmp.eq.s32.totalorder %s27, 0
      %p200 = por %p198, %p199
      %p201 = scmp.ne.s32.totalorder %s189, %s190
      %p202 = scmp.eq.s32.totalorder %s28, 1
      %p203 = por %p201, %p202
      %p205 = scmp.ne.s32.totalorder %s190, %s204
      %p206 = scmp.eq.s32.totalorder %s28, 0
      %p207 = por %p205, %p206
      %s208 = ssub.s32 %s22, %s29
      %p209 = scmp.eq.s32.totalorder %s208, 0
      %s211 = sadd.s32 %s210, 1
      %s212 = scalar_select %p209, %s210, %s211
      %p215 = pneg %p209
      %p216 = scmp.eq.s32.totalorder %s22, 1
      %p217 = por %p215, %p216
      %p218 = scmp.ne.s32.totalorder %s210, %s213
      %p219 = scmp.eq.s32.totalorder %s22, 0
      %p220 = por %p218, %p219
      %p221 = scmp.ne.s32.totalorder %s210, %s213
      %p222 = scmp.eq.s32.totalorder %s27, 1
      %p223 = por %p221, %p222
      %p224 = scmp.ne.s32.totalorder %s213, %s214
      %p225 = scmp.eq.s32.totalorder %s27, 0
      %p226 = por %p224, %p225
      %p227 = scmp.ne.s32.totalorder %s213, %s214
      %p228 = scmp.eq.s32.totalorder %s28, 1
      %p229 = por %p227, %p228
      %p231 = scmp.ne.s32.totalorder %s214, %s230
      %p232 = scmp.eq.s32.totalorder %s28, 0
      %p233 = por %p231, %p232
      %s234 = ssub.s32 %s22, %s29
      %p235 = scmp.eq.s32.totalorder %s234, 0
      %s237 = sadd.s32 %s236, 1
      %s238 = scalar_select %p235, %s236, %s237
      %p241 = pneg %p235
      %p242 = scmp.eq.s32.totalorder %s22, 1
      %p243 = por %p241, %p242
      %p244 = scmp.ne.s32.totalorder %s236, %s239
      %p245 = scmp.eq.s32.totalorder %s22, 0
      %p246 = por %p244, %p245
      %p247 = scmp.ne.s32.totalorder %s236, %s239
      %p248 = scmp.eq.s32.totalorder %s27, 1
      %p249 = por %p247, %p248
      %p250 = scmp.ne.s32.totalorder %s239, %s240
      %p251 = scmp.eq.s32.totalorder %s27, 0
      %p252 = por %p250, %p251
      %p253 = scmp.ne.s32.totalorder %s239, %s240
      %p254 = scmp.eq.s32.totalorder %s28, 1
      %p255 = por %p253, %p254
      %p257 = scmp.ne.s32.totalorder %s240, %s256
      %p258 = scmp.eq.s32.totalorder %s28, 0
      %p259 = por %p257, %p258
      %p260 = scmp.le.s32.totalorder 1, %s22
      %p261 = scmp.lt.s32.totalorder %s22, 3
      %p262 = pnand %p260, %p261
      %p263 = pneg %p262
      // Predicated region
      $region9: #{tpu_custom_call.1} parent=5 // pred_check
        _
      $region10: #{tpu_custom_call.1} parent=5 // pred_check_branch
        %265 = sbr.rel (%p262) target = $region12
      $region11: #{tpu_custom_call.1} parent=5 // pred_region
        %s266 = ssub.s32 %s22, 1
        // Predicated region
        $region13: #{tpu_custom_call.1} parent=11 // pred_check
          %p267 = pneg %p95
        $region14: #{tpu_custom_call.1} parent=11 // pred_check_branch
          %269 = sbr.rel (%p267) target = $region16
        $region15: #{tpu_custom_call.1} parent=11 // pred_region
          _
        $region16: #{tpu_custom_call.1} parent=11 // pred_fallthru
          _
        // Predicated region
        $region17: #{tpu_custom_call.1} parent=11 // pred_check
          %p270 = pneg %p116
        $region18: #{tpu_custom_call.1} parent=11 // pred_check_branch
          %272 = sbr.rel (%p270) target = $region20
        $region19: #{tpu_custom_call.1} parent=11 // pred_region
          _
        $region20: #{tpu_custom_call.1} parent=11 // pred_fallthru
          _
        // Predicated region
        $region21: #{tpu_custom_call.1} parent=11 // pred_check
          %p273 = pneg %p137
        $region22: #{tpu_custom_call.1} parent=11 // pred_check_branch
          %275 = sbr.rel (%p273) target = $region24
        $region23: #{tpu_custom_call.1} parent=11 // pred_region
          _
        $region24: #{tpu_custom_call.1} parent=11 // pred_fallthru
          _
        // Predicated region
        $region25: #{tpu_custom_call.1} parent=11 // pred_check
          %p276 = pneg %p158
        $region26: #{tpu_custom_call.1} parent=11 // pred_check_branch
          %278 = sbr.rel (%p276) target = $region28
        $region27: #{tpu_custom_call.1} parent=11 // pred_region
          _
        $region28: #{tpu_custom_call.1} parent=11 // pred_fallthru
          _
        // Predicated region
        $region29: #{tpu_custom_call.1} parent=11 // pred_check
          %p279 = pneg %p179
        $region30: #{tpu_custom_call.1} parent=11 // pred_check_branch
          %281 = sbr.rel (%p279) target = $region32
        $region31: #{tpu_custom_call.1} parent=11 // pred_region
          _
        $region32: #{tpu_custom_call.1} parent=11 // pred_fallthru
          _
        // Predicated region
        $region33: #{tpu_custom_call.1} parent=11 // pred_check
          %p282 = pneg %p200
        $region34: #{tpu_custom_call.1} parent=11 // pred_check_branch
          %284 = sbr.rel (%p282) target = $region36
        $region35: #{tpu_custom_call.1} parent=11 // pred_region
          _
        $region36: #{tpu_custom_call.1} parent=11 // pred_fallthru
          _
      $region12: #{tpu_custom_call.1} parent=5 // pred_fallthru
        _
      %p285 = scmp.lt.s32.totalorder %s22, 2
      // Predicated region
      $region37: #{tpu_custom_call.1} parent=5 // pred_check
        %p286 = pneg %p285
      $region38: #{tpu_custom_call.1} parent=5 // pred_check_branch
        %288 = sbr.rel (%p286) target = $region40
      $region39: #{tpu_custom_call.1} parent=5 // pred_region
        // Predicated region
        $region41: #{tpu_custom_call.1} parent=39 // pred_check
          %p289 = pneg %p42
        $region42: #{tpu_custom_call.1} parent=39 // pred_check_branch
          %291 = sbr.rel (%p289) target = $region44
        $region43: #{tpu_custom_call.1} parent=39 // pred_region
          %p292 = scmp.lt.s32.totalorder %s22, 1
          %s293 = scalar_select %p292, %s22, 1
          %s294 = smul.addr %s293, 2
          %s295 = smul.addr %s294, 8
          %s296 = scalar_lea.vmem %s0, %s295
        $region44: #{tpu_custom_call.1} parent=39 // pred_fallthru
          _
        // Predicated region
        $region45: #{tpu_custom_call.1} parent=39 // pred_check
          %p297 = pneg %p68
        $region46: #{tpu_custom_call.1} parent=39 // pred_check_branch
          %299 = sbr.rel (%p297) target = $region48
        $region47: #{tpu_custom_call.1} parent=39 // pred_region
          %p300 = scmp.lt.s32.totalorder %s22, 1
          %s301 = scalar_select %p300, %s22, 1
          %s302 = scalar_lea.vmem %s1, %s301
        $region48: #{tpu_custom_call.1} parent=39 // pred_fallthru
          _
      $region40: #{tpu_custom_call.1} parent=5 // pred_fallthru
        _
      %p303 = scmp.le.s32.totalorder 1, %s22
      %p304 = scmp.lt.s32.totalorder %s22, 3
      %p305 = pnand %p303, %p304
      %p306 = pneg %p305
      // Predicated region
      $region49: #{tpu_custom_call.1} parent=5 // pred_check
        _
      $region50: #{tpu_custom_call.1} parent=5 // pred_check_branch
        %308 = sbr.rel (%p305) target = $region52
      $region51: #{tpu_custom_call.1} parent=5 // pred_region
        %s309 = ssub.s32 %s22, 1
        %p310 = scmp.lt.s32.totalorder %s27, 1
        %s311 = scalar_select %p310, %s27, 1
        %s312 = smul.addr %s311, 2
        %s313 = smul.addr %s312, 8
        %s314 = scalar_lea.vmem %s0, %s313
        %p315 = pneg %p48
        %p316 = pneg %p45
        %p317 = scmp.lt.s32.totalorder %s27, 1
        %s318 = scalar_select %p317, %s27, 1
        %s319 = scalar_lea.vmem %s1, %s318
        %p320 = pneg %p74
        %p321 = pneg %p71
        %p322 = pneg %p95
        %p323 = pneg %p92
        %p324 = pneg %p116
        %p325 = pneg %p113
        %p326 = pneg %p137
        %p327 = pneg %p134
        %p328 = pneg %p158
        %p329 = pneg %p155
        %p330 = pneg %p179
        %p331 = pneg %p176
        %p332 = pneg %p200
        %p333 = pneg %p197
        %p334 = pneg %p226
        %p335 = pneg %p223
        %s336 = sand.u32 %s213, 1
        %s337 = scalar_lea.sflag [#allocation5], %s336
        %s338 = sand.u32 %s213, 1
        %s339 = smul.addr %s338, 16
        %s340 = scalar_lea.vmem [#allocation4], %s339
        %p341 = pneg %p252
        %p342 = pneg %p249
        %s343 = sand.u32 %s239, 1
        %s344 = scalar_lea.sflag [#allocation7], %s343
        %s345 = sand.u32 %s239, 1
        %s346 = smul.addr %s345, 64
        %s347 = scalar_lea.vmem [#allocation6], %s346
        %p348 = scmp.lt.s32.totalorder %s27, 1
        %s349 = scalar_select %p348, %s27, 1
        %s350 = smul.addr %s349, 2
        %s351 = smul.addr %s350, 8
        %s352 = scalar_lea.vmem %s0, %s351
        %p353 = scmp.lt.s32.totalorder %s27, 1
        %s354 = scalar_select %p353, %s27, 1
        %s355 = scalar_lea.vmem %s1, %s354
        %v356 = vld [vmem:[%s352] sm:$0xff]
        %v357 = vld [vmem:[%s352 + $0x8] sm:$0xff]
        %v358 = vld [vmem:[%s355] sm:$0x1]
        %v359 = vld [vmem:[%s2] sm:$0xff]
        %v360 = vld [vmem:[%s2 + $0x8] sm:$0xff]
        %v361 = vld [vmem:[%s2 + $0x10] sm:$0xff]
        %v362 = vld [vmem:[%s2 + $0x18] sm:$0xff]
        %v363 = vld [vmem:[%s2 + $0x20] sm:$0xff]
        %v364 = vld [vmem:[%s2 + $0x28] sm:$0xff]
        %v365 = vld [vmem:[%s2 + $0x30] sm:$0xff]
        %v366 = vld [vmem:[%s2 + $0x38] sm:$0xff]
        %v367 = vld [vmem:[%s2 + $0x40] sm:$0xff]
        %v368 = vld [vmem:[%s2 + $0x48] sm:$0xff]
        %v369 = vld [vmem:[%s2 + $0x50] sm:$0xff]
        %v370 = vld [vmem:[%s2 + $0x58] sm:$0xff]
        %v371 = vld [vmem:[%s2 + $0x60] sm:$0xff]
        %v372 = vld [vmem:[%s2 + $0x68] sm:$0xff]
        %v373 = vld [vmem:[%s2 + $0x70] sm:$0xff]
        %v374 = vld [vmem:[%s2 + $0x78] sm:$0xff]
        %v375 = vld [vmem:[%s2 + $0x80] sm:$0xff]
        %v376 = vld [vmem:[%s2 + $0x88] sm:$0xff]
        %v377 = vld [vmem:[%s2 + $0x90] sm:$0xff]
        %v378 = vld [vmem:[%s2 + $0x98] sm:$0xff]
        %v379 = vld [vmem:[%s2 + $0xa0] sm:$0xff]
        %v380 = vld [vmem:[%s2 + $0xa8] sm:$0xff]
        %v381 = vld [vmem:[%s2 + $0xb0] sm:$0xff]
        %v382 = vld [vmem:[%s2 + $0xb8] sm:$0xff]
        %v383 = vld [vmem:[%s3] sm:$0xff]
        %v384 = vld [vmem:[%s3 + $0x8] sm:$0xff]
        %v385 = vld [vmem:[%s3 + $0x10] sm:$0xff]
        %v386 = vld [vmem:[%s3 + $0x18] sm:$0xff]
        %v387 = vld [vmem:[%s3 + $0x20] sm:$0xff]
        %v388 = vld [vmem:[%s3 + $0x28] sm:$0xff]
        %v389 = vld [vmem:[%s3 + $0x30] sm:$0xff]
        %v390 = vld [vmem:[%s3 + $0x38] sm:$0xff]
        %v391 = vld [vmem:[%s3 + $0x40] sm:$0xff]
        %v392 = vld [vmem:[%s3 + $0x48] sm:$0xff]
        %v393 = vld [vmem:[%s3 + $0x50] sm:$0xff]
        %v394 = vld [vmem:[%s3 + $0x58] sm:$0xff]
        %v395 = vld [vmem:[%s3 + $0x60] sm:$0xff]
        %v396 = vld [vmem:[%s3 + $0x68] sm:$0xff]
        %v397 = vld [vmem:[%s3 + $0x70] sm:$0xff]
        %v398 = vld [vmem:[%s3 + $0x78] sm:$0xff]
        %v399 = vld [vmem:[%s3 + $0x80] sm:$0xff]
        %v400 = vld [vmem:[%s3 + $0x88] sm:$0xff]
        %v401 = vld [vmem:[%s3 + $0x90] sm:$0xff]
        %v402 = vld [vmem:[%s3 + $0x98] sm:$0xff]
        %v403 = vld [vmem:[%s3 + $0xa0] sm:$0xff]
        %v404 = vld [vmem:[%s3 + $0xa8] sm:$0xff]
        %v405 = vld [vmem:[%s3 + $0xb0] sm:$0xff]
        %v406 = vld [vmem:[%s3 + $0xb8] sm:$0xff]
        %408 = vset.pattern.permute.xlu0 0
        %409 = vperm.xlu0 %408, %v383
        %v410 = vpop.permute.xlu0 %409
        %413 = vset.pattern.permute.xlu0 0
        %414 = vperm.xlu0 %413, %v384
        %v415 = vpop.permute.xlu0 %414
        %418 = vset.pattern.permute.xlu0 0
        %419 = vperm.xlu0 %418, %v385
        %v420 = vpop.permute.xlu0 %419
        %423 = vset.pattern.permute.xlu0 0
        %424 = vperm.xlu0 %423, %v386
        %v425 = vpop.permute.xlu0 %424
        %428 = vset.pattern.permute.xlu0 0
        %429 = vperm.xlu0 %428, %v387
        %v430 = vpop.permute.xlu0 %429
        %433 = vset.pattern.permute.xlu0 0
        %434 = vperm.xlu0 %433, %v388
        %v435 = vpop.permute.xlu0 %434
        %438 = vset.pattern.permute.xlu0 0
        %439 = vperm.xlu0 %438, %v389
        %v440 = vpop.permute.xlu0 %439
        %443 = vset.pattern.permute.xlu0 0
        %444 = vperm.xlu0 %443, %v390
        %v445 = vpop.permute.xlu0 %444
        %448 = vset.pattern.permute.xlu0 0
        %449 = vperm.xlu0 %448, %v391
        %v450 = vpop.permute.xlu0 %449
        %453 = vset.pattern.permute.xlu0 0
        %454 = vperm.xlu0 %453, %v392
        %v455 = vpop.permute.xlu0 %454
        %458 = vset.pattern.permute.xlu0 0
        %459 = vperm.xlu0 %458, %v393
        %v460 = vpop.permute.xlu0 %459
        %463 = vset.pattern.permute.xlu0 0
        %464 = vperm.xlu0 %463, %v394
        %v465 = vpop.permute.xlu0 %464
        %468 = vset.pattern.permute.xlu0 0
        %469 = vperm.xlu0 %468, %v395
        %v470 = vpop.permute.xlu0 %469
        %473 = vset.pattern.permute.xlu0 0
        %474 = vperm.xlu0 %473, %v396
        %v475 = vpop.permute.xlu0 %474
        %478 = vset.pattern.permute.xlu0 0
        %479 = vperm.xlu0 %478, %v397
        %v480 = vpop.permute.xlu0 %479
        %483 = vset.pattern.permute.xlu0 0
        %484 = vperm.xlu0 %483, %v398
        %v485 = vpop.permute.xlu0 %484
        %488 = vset.pattern.permute.xlu0 0
        %489 = vperm.xlu0 %488, %v399
        %v490 = vpop.permute.xlu0 %489
        %493 = vset.pattern.permute.xlu0 0
        %494 = vperm.xlu0 %493, %v400
        %v495 = vpop.permute.xlu0 %494
        %498 = vset.pattern.permute.xlu0 0
        %499 = vperm.xlu0 %498, %v401
        %v500 = vpop.permute.xlu0 %499
        %503 = vset.pattern.permute.xlu0 0
        %504 = vperm.xlu0 %503, %v402
        %v505 = vpop.permute.xlu0 %504
        %508 = vset.pattern.permute.xlu0 0
        %509 = vperm.xlu0 %508, %v403
        %v510 = vpop.permute.xlu0 %509
        %513 = vset.pattern.permute.xlu0 0
        %514 = vperm.xlu0 %513, %v404
        %v515 = vpop.permute.xlu0 %514
        %518 = vset.pattern.permute.xlu0 0
        %519 = vperm.xlu0 %518, %v405
        %v520 = vpop.permute.xlu0 %519
        %523 = vset.pattern.permute.xlu0 0
        %524 = vperm.xlu0 %523, %v406
        %v525 = vpop.permute.xlu0 %524
        %vm527 = vcmask 523264
        %v529 = vsel %vm527, %v359, 0
        %v532 = vsel %vm527, %v360, 0
        %v535 = vsel %vm527, %v361, 0
        %v538 = vsel %vm527, %v362, 0
        %v541 = vsel %vm527, %v363, 0
        %v544 = vsel %vm527, %v364, 0
        %v547 = vsel %vm527, %v365, 0
        %v550 = vsel %vm527, %v366, 0
        %v553 = vsel %vm527, %v367, 0
        %v556 = vsel %vm527, %v368, 0
        %v559 = vsel %vm527, %v369, 0
        %v562 = vsel %vm527, %v370, 0
        %v565 = vsel %vm527, %v371, 0
        %v568 = vsel %vm527, %v372, 0
        %v571 = vsel %vm527, %v373, 0
        %v574 = vsel %vm527, %v374, 0
        %v577 = vsel %vm527, %v375, 0
        %v580 = vsel %vm527, %v376, 0
        %v583 = vsel %vm527, %v377, 0
        %v586 = vsel %vm527, %v378, 0
        %v589 = vsel %vm527, %v379, 0
        %v592 = vsel %vm527, %v380, 0
        %v595 = vsel %vm527, %v381, 0
        %v598 = vsel %vm527, %v382, 0
        %v601 = vsel %vm527, %v356, 0
        %v604 = vsel %vm527, %v357, 0
        %606 = vmatprep.subr.mxu0 0.0
        %607 = vmatpush1.xpose.msra.mxu0 %v601
        %608 = vmatprep.subr.mxu0 0.0
        %609 = vmatpush1.xpose.msra.mxu0 %v604
        %610 = vmatprep.subr.mxu0 0.0
        %611 = vmatpush1.xpose.msra.mxu0 0.0
        %612 = vmatprep.subr.mxu0 0.0
        %613 = vmatpush1.xpose.msra.mxu0 0.0
        %614 = vmatprep.subr.mxu0 0.0
        %615 = vmatpush1.xpose.msra.mxu0 0.0
        %616 = vmatprep.subr.mxu0 0.0
        %617 = vmatpush1.xpose.msra.mxu0 0.0
        %618 = vmatprep.subr.mxu0 0.0
        %619 = vmatpush1.xpose.msra.mxu0 0.0
        %620 = vmatprep.subr.mxu0 0.0
        %621 = vmatpush1.xpose.msra.mxu0 0.0
        %622 = vmatprep.subr.mxu0 0.0
        %623 = vmatpush1.xpose.msra.mxu0 0.0
        %624 = vmatprep.subr.mxu0 0.0
        %625 = vmatpush1.xpose.msra.mxu0 0.0
        %626 = vmatprep.subr.mxu0 0.0
        %627 = vmatpush1.xpose.msra.mxu0 0.0
        %628 = vmatprep.subr.mxu0 0.0
        %629 = vmatpush1.xpose.msra.mxu0 0.0
        %630 = vmatprep.subr.mxu0 0.0
        %631 = vmatpush1.xpose.msra.mxu0 0.0
        %632 = vmatprep.subr.mxu0 0.0
        %633 = vmatpush1.xpose.msra.mxu0 0.0
        %634 = vmatprep.subr.mxu0 0.0
        %635 = vmatpush1.xpose.msra.mxu0 0.0
        %636 = vmatprep.subr.mxu0 0.0
        %637 = vmatpush1.xpose.msra.mxu0 0.0
        %638 = vmatprep.subr.mxu0 0.0
        %639 = vmatpush1.xpose.msra.mxu0 0.0
        %640 = vmatprep.subr.mxu0 0.0
        %641 = vmatpush1.xpose.msra.mxu0 0.0
        %642 = vmatprep.subr.mxu0 0.0
        %643 = vmatpush1.xpose.msra.mxu0 0.0
        %644 = vmatprep.subr.mxu0 0.0
        %645 = vmatpush1.xpose.msra.mxu0 0.0
        %646 = vmatprep.subr.mxu0 0.0
        %647 = vmatpush1.xpose.msra.mxu0 0.0
        %648 = vmatprep.subr.mxu0 0.0
        %649 = vmatpush1.xpose.msra.mxu0 0.0
        %650 = vmatprep.subr.mxu0 0.0
        %651 = vmatpush1.xpose.msra.mxu0 0.0
        %652 = vmatprep.subr.mxu0 0.0
        %653 = vmatpush1.xpose.msra.mxu0 0.0
        %654 = vmatprep.subr.mxu0 0.0
        %655 = vmatpush1.xpose.msra.mxu0 0.0
        %656 = vmatprep.subr.mxu0 0.0
        %657 = vmatpush1.xpose.msra.mxu0 0.0
        %658 = vmatprep.subr.mxu0 0.0
        %659 = vmatpush1.xpose.msra.mxu0 0.0
        %660 = vmatprep.subr.mxu0 0.0
        %661 = vmatpush1.xpose.msra.mxu0 0.0
        %662 = vmatprep.subr.mxu0 0.0
        %663 = vmatpush1.xpose.msra.mxu0 0.0
        %664 = vmatprep.subr.mxu0 0.0
        %665 = vmatpush1.xpose.msra.mxu0 0.0
        %666 = vmatprep.subr.mxu0 0.0
        %667 = vmatpush1.xpose.msra.mxu0 0.0
        %668 = vmatprep.subr.mxu0 0.0
        %669 = vmatpush1.xpose.msra.mxu0 0.0
        %670 = vmatprep.mubr.f32.mxu0 0.0
        %671 = vmatmul.mubr.f32.gmra.mrb[0].mxu0 %v529
        %v672 = vpop.f32.mrb[0].mxu0
        %v673 = vadd.f32 %v410, %v672
        %v674 = vpop.f32.mrb[0].mxu0
        %675 = vmatprep.mubr.f32.mxu0 0.0
        %676 = vmatmul.mubr.f32.gmra.mrb[0].mxu0 %v532
        %v677 = vpop.f32.mrb[0].mxu0
        %v678 = vadd.f32 %v415, %v677
        %v679 = vpop.f32.mrb[0].mxu0
        %680 = vmatprep.mubr.f32.mxu0 0.0
        %681 = vmatmul.mubr.f32.gmra.mrb[0].mxu0 %v535
        %v682 = vpop.f32.mrb[0].mxu0
        %v683 = vadd.f32 %v420, %v682
        %v684 = vpop.f32.mrb[0].mxu0
        %685 = vmatprep.mubr.f32.mxu0 0.0
        %686 = vmatmul.mubr.f32.gmra.mrb[0].mxu0 %v538
        %v687 = vpop.f32.mrb[0].mxu0
        %v688 = vadd.f32 %v425, %v687
        %v689 = vpop.f32.mrb[0].mxu0
        %690 = vmatprep.mubr.f32.mxu0 0.0
        %691 = vmatmul.mubr.f32.gmra.mrb[0].mxu0 %v541
        %v692 = vpop.f32.mrb[0].mxu0
        %v693 = vadd.f32 %v430, %v692
        %v694 = vpop.f32.mrb[0].mxu0
        %695 = vmatprep.mubr.f32.mxu0 0.0
        %696 = vmatmul.mubr.f32.gmra.mrb[0].mxu0 %v544
        %v697 = vpop.f32.mrb[0].mxu0
        %v698 = vadd.f32 %v435, %v697
        %v699 = vpop.f32.mrb[0].mxu0
        %700 = vmatprep.mubr.f32.mxu0 0.0
        %701 = vmatmul.mubr.f32.gmra.mrb[0].mxu0 %v547
        %v702 = vpop.f32.mrb[0].mxu0
        %v703 = vadd.f32 %v440, %v702
        %v704 = vpop.f32.mrb[0].mxu0
        %705 = vmatprep.mubr.f32.mxu0 0.0
        %706 = vmatmul.mubr.f32.gmra.mrb[0].mxu0 %v550
        %v707 = vpop.f32.mrb[0].mxu0
        %v708 = vadd.f32 %v445, %v707
        %v709 = vpop.f32.mrb[0].mxu0
        %710 = vmatprep.mubr.f32.mxu0 0.0
        %711 = vmatmul.mubr.f32.gmra.mrb[0].mxu0 %v553
        %v712 = vpop.f32.mrb[0].mxu0
        %v713 = vadd.f32 %v450, %v712
        %v714 = vpop.f32.mrb[0].mxu0
        %715 = vmatprep.mubr.f32.mxu0 0.0
        %716 = vmatmul.mubr.f32.gmra.mrb[0].mxu0 %v556
        %v717 = vpop.f32.mrb[0].mxu0
        %v718 = vadd.f32 %v455, %v717
        %v719 = vpop.f32.mrb[0].mxu0
        %720 = vmatprep.mubr.f32.mxu0 0.0
        %721 = vmatmul.mubr.f32.gmra.mrb[0].mxu0 %v559
        %v722 = vpop.f32.mrb[0].mxu0
        %v723 = vadd.f32 %v460, %v722
        %v724 = vpop.f32.mrb[0].mxu0
        %725 = vmatprep.mubr.f32.mxu0 0.0
        %726 = vmatmul.mubr.f32.gmra.mrb[0].mxu0 %v562
        %v727 = vpop.f32.mrb[0].mxu0
        %v728 = vadd.f32 %v465, %v727
        %v729 = vpop.f32.mrb[0].mxu0
        %730 = vmatprep.mubr.f32.mxu0 0.0
        %731 = vmatmul.mubr.f32.gmra.mrb[0].mxu0 %v565
        %v732 = vpop.f32.mrb[0].mxu0
        %v733 = vadd.f32 %v470, %v732
        %v734 = vpop.f32.mrb[0].mxu0
        %735 = vmatprep.mubr.f32.mxu0 0.0
        %736 = vmatmul.mubr.f32.gmra.mrb[0].mxu0 %v568
        %v737 = vpop.f32.mrb[0].mxu0
        %v738 = vadd.f32 %v475, %v737
        %v739 = vpop.f32.mrb[0].mxu0
        %740 = vmatprep.mubr.f32.mxu0 0.0
        %741 = vmatmul.mubr.f32.gmra.mrb[0].mxu0 %v571
        %v742 = vpop.f32.mrb[0].mxu0
        %v743 = vadd.f32 %v480, %v742
        %v744 = vpop.f32.mrb[0].mxu0
        %745 = vmatprep.mubr.f32.mxu0 0.0
        %746 = vmatmul.mubr.f32.gmra.mrb[0].mxu0 %v574
        %v747 = vpop.f32.mrb[0].mxu0
        %v748 = vadd.f32 %v485, %v747
        %v749 = vpop.f32.mrb[0].mxu0
        %750 = vmatprep.mubr.f32.mxu0 0.0
        %751 = vmatmul.mubr.f32.gmra.mrb[0].mxu0 %v577
        %v752 = vpop.f32.mrb[0].mxu0
        %v753 = vadd.f32 %v490, %v752
        %v754 = vpop.f32.mrb[0].mxu0
        %755 = vmatprep.mubr.f32.mxu0 0.0
        %756 = vmatmul.mubr.f32.gmra.mrb[0].mxu0 %v580
        %v757 = vpop.f32.mrb[0].mxu0
        %v758 = vadd.f32 %v495, %v757
        %v759 = vpop.f32.mrb[0].mxu0
        %760 = vmatprep.mubr.f32.mxu0 0.0
        %761 = vmatmul.mubr.f32.gmra.mrb[0].mxu0 %v583
        %v762 = vpop.f32.mrb[0].mxu0
        %v763 = vadd.f32 %v500, %v762
        %v764 = vpop.f32.mrb[0].mxu0
        %765 = vmatprep.mubr.f32.mxu0 0.0
        %766 = vmatmul.mubr.f32.gmra.mrb[0].mxu0 %v586
        %v767 = vpop.f32.mrb[0].mxu0
        %v768 = vadd.f32 %v505, %v767
        %v769 = vpop.f32.mrb[0].mxu0
        %770 = vmatprep.mubr.f32.mxu0 0.0
        %771 = vmatmul.mubr.f32.gmra.mrb[0].mxu0 %v589
        %v772 = vpop.f32.mrb[0].mxu0
        %v773 = vadd.f32 %v510, %v772
        %v774 = vpop.f32.mrb[0].mxu0
        %775 = vmatprep.mubr.f32.mxu0 0.0
        %776 = vmatmul.mubr.f32.gmra.mrb[0].mxu0 %v592
        %v777 = vpop.f32.mrb[0].mxu0
        %v778 = vadd.f32 %v515, %v777
        %v779 = vpop.f32.mrb[0].mxu0
        %780 = vmatprep.mubr.f32.mxu0 0.0
        %781 = vmatmul.mubr.f32.gmra.mrb[0].mxu0 %v595
        %v782 = vpop.f32.mrb[0].mxu0
        %v783 = vadd.f32 %v520, %v782
        %v784 = vpop.f32.mrb[0].mxu0
        %785 = vmatprep.mubr.f32.mxu0 0.0
        %786 = vmatmul.mubr.f32.gmra.mrb[0].mxu0 %v598
        %v787 = vpop.f32.mrb[0].mxu0
        %v788 = vadd.f32 %v525, %v787
        %v789 = vpop.f32.mrb[0].mxu0
        %790 = vdwg.mxu0
        %vm791 = vcmask 130048
        %792 = vst.msk [vmem:[#allocation2] sm:$0xff] %vm791, %v673
        %793 = vst.msk [vmem:[#allocation2 + $0x8] sm:$0xff] %vm791, %v678
        %794 = vst.msk [vmem:[#allocation2 + $0x10] sm:$0xff] %vm791, %v683
        %795 = vst.msk [vmem:[#allocation2 + $0x18] sm:$0xff] %vm791, %v688
        %796 = vst.msk [vmem:[#allocation2 + $0x20] sm:$0xff] %vm791, %v693
        %797 = vst.msk [vmem:[#allocation2 + $0x28] sm:$0xff] %vm791, %v698
        %798 = vst.msk [vmem:[#allocation2 + $0x30] sm:$0xff] %vm791, %v703
        %799 = vst.msk [vmem:[#allocation2 + $0x38] sm:$0xff] %vm791, %v708
        %800 = vst.msk [vmem:[#allocation2 + $0x40] sm:$0xff] %vm791, %v713
        %801 = vst.msk [vmem:[#allocation2 + $0x48] sm:$0xff] %vm791, %v718
        %802 = vst.msk [vmem:[#allocation2 + $0x50] sm:$0xff] %vm791, %v723
        %803 = vst.msk [vmem:[#allocation2 + $0x58] sm:$0xff] %vm791, %v728
        %804 = vst.msk [vmem:[#allocation2 + $0x60] sm:$0xff] %vm791, %v733
        %805 = vst.msk [vmem:[#allocation2 + $0x68] sm:$0xff] %vm791, %v738
        %806 = vst.msk [vmem:[#allocation2 + $0x70] sm:$0xff] %vm791, %v743
        %807 = vst.msk [vmem:[#allocation2 + $0x78] sm:$0xff] %vm791, %v748
        %808 = vst.msk [vmem:[#allocation2 + $0x80] sm:$0xff] %vm791, %v753
        %809 = vst.msk [vmem:[#allocation2 + $0x88] sm:$0xff] %vm791, %v758
        %810 = vst.msk [vmem:[#allocation2 + $0x90] sm:$0xff] %vm791, %v763
        %811 = vst.msk [vmem:[#allocation2 + $0x98] sm:$0xff] %vm791, %v768
        %812 = vst.msk [vmem:[#allocation2 + $0xa0] sm:$0xff] %vm791, %v773
        %813 = vst.msk [vmem:[#allocation2 + $0xa8] sm:$0xff] %vm791, %v778
        %814 = vst.msk [vmem:[#allocation2 + $0xb0] sm:$0xff] %vm791, %v783
        %815 = vst.msk [vmem:[#allocation2 + $0xb8] sm:$0xff] %vm791, %v788
        loop: start=0, step=1, limit=4
        $region53: #{tpu_custom_call.1} parent=51 // loop_pre_header
          _
        $region54: #{tpu_custom_call.1} parent=51 // loop_header
          %s817 = sphi 0, %s821
          %p818 = scmp.ge.s32.totalorder %s817, 4
        $region55: #{tpu_custom_call.1} parent=51 // loop_header_branch
          %820 = sbr.rel (%p818) target = $region59
        $region56: #{tpu_custom_call.1} parent=51 // loop_body
          %s822 = smul.u32 %s817, 16
          %s823 = scalar_lea.vmem [#allocation2], %s822
          %v824 = vld [vmem:[%s823] sm:$0xff]
          %v825 = vld [vmem:[%s823 + $0x8] sm:$0xff]
          %s826 = sadd.s32 %s822, 64
          %s827 = scalar_lea.vmem [#allocation2], %s826
          %v828 = vld [vmem:[%s827] sm:$0xff]
          %v829 = vld [vmem:[%s827 + $0x8] sm:$0xff]
          %s830 = sadd.s32 %s822, 128
          %s831 = scalar_lea.vmem [#allocation2], %s830
          %v832 = vld [vmem:[%s831] sm:$0xff]
          %v833 = vld [vmem:[%s831 + $0x8] sm:$0xff]
          %834 = vxpose.xlu0.b32.start [1/16] %v824, 128
          %835 = vxpose.xlu0.b32.cont [2/16] %v825, 128
          %836 = vxpose.xlu0.b32.cont [3/16] 0.0, 128
          %837 = vxpose.xlu0.b32.cont [4/16] 0.0, 128
          %838 = vxpose.xlu0.b32.cont [5/16] 0.0, 128
          %839 = vxpose.xlu0.b32.cont [6/16] 0.0, 128
          %840 = vxpose.xlu0.b32.cont [7/16] 0.0, 128
          %841 = vxpose.xlu0.b32.cont [8/16] 0.0, 128
          %842 = vxpose.xlu0.b32.cont [9/16] 0.0, 128
          %843 = vxpose.xlu0.b32.cont [10/16] 0.0, 128
          %844 = vxpose.xlu0.b32.cont [11/16] 0.0, 128
          %845 = vxpose.xlu0.b32.cont [12/16] 0.0, 128
          %846 = vxpose.xlu0.b32.cont [13/16] 0.0, 128
          %847 = vxpose.xlu0.b32.cont [14/16] 0.0, 128
          %848 = vxpose.xlu0.b32.cont [15/16] 0.0, 128
          %849 = vxpose.xlu0.b32.end [16/16] 0.0, 128
          %v850 = vpop.trf.xlu0
          %v851 = vpop.trf.xlu0
          %v852 = vpop.trf.xlu0
          %v853 = vpop.trf.xlu0
          %v854 = vpop.trf.xlu0
          %v855 = vpop.trf.xlu0
          %v856 = vpop.trf.xlu0
          %v857 = vpop.trf.xlu0
          %v858 = vpop.trf.xlu0
          %v859 = vpop.trf.xlu0
          %v860 = vpop.trf.xlu0
          %v861 = vpop.trf.xlu0
          %v862 = vpop.trf.xlu0
          %v863 = vpop.trf.xlu0
          %v864 = vpop.trf.xlu0
          %v865 = vpop.trf.xlu0
          %v867 = vlaneseq
          %v868 = vshrl.u32 %v867, 7
          %v869 = vsub.s32 0, %v868
          %v870 = vrot.slane %v358, %v869
          %v873 = vsel %vm791, %v850, 0
          %v876 = vsel %vm791, %v851, 0
          %878 = vmatprep.subr.mxu0 0.0
          %879 = vmatpush1.msra.mxu0 %v828
          %880 = vmatprep.subr.mxu0 0.0
          %881 = vmatpush1.msra.mxu0 %v829
          %882 = vmatprep.subr.mxu0 0.0
          %883 = vmatpush1.msra.mxu0 0.0
          %884 = vmatprep.subr.mxu0 0.0
          %885 = vmatpush1.msra.mxu0 0.0
          %886 = vmatprep.subr.mxu0 0.0
          %887 = vmatpush1.msra.mxu0 0.0
          %888 = vmatprep.subr.mxu0 0.0
          %889 = vmatpush1.msra.mxu0 0.0
          %890 = vmatprep.subr.mxu0 0.0
          %891 = vmatpush1.msra.mxu0 0.0
          %892 = vmatprep.subr.mxu0 0.0
          %893 = vmatpush1.msra.mxu0 0.0
          %894 = vmatprep.subr.mxu0 0.0
          %895 = vmatpush1.msra.mxu0 0.0
          %896 = vmatprep.subr.mxu0 0.0
          %897 = vmatpush1.msra.mxu0 0.0
          %898 = vmatprep.subr.mxu0 0.0
          %899 = vmatpush1.msra.mxu0 0.0
          %900 = vmatprep.subr.mxu0 0.0
          %901 = vmatpush1.msra.mxu0 0.0
          %902 = vmatprep.subr.mxu0 0.0
          %903 = vmatpush1.msra.mxu0 0.0
          %904 = vmatprep.subr.mxu0 0.0
          %905 = vmatpush1.msra.mxu0 0.0
          %906 = vmatprep.subr.mxu0 0.0
          %907 = vmatpush1.msra.mxu0 0.0
          %908 = vmatprep.subr.mxu0 0.0
          %909 = vmatpush1.msra.mxu0 0.0
          %910 = vmatprep.subr.mxu0 0.0
          %911 = vmatpush1.msra.mxu0 0.0
          %912 = vmatprep.subr.mxu0 0.0
          %913 = vmatpush1.msra.mxu0 0.0
          %914 = vmatprep.subr.mxu0 0.0
          %915 = vmatpush1.msra.mxu0 0.0
          %916 = vmatprep.subr.mxu0 0.0
          %917 = vmatpush1.msra.mxu0 0.0
          %918 = vmatprep.subr.mxu0 0.0
          %919 = vmatpush1.msra.mxu0 0.0
          %920 = vmatprep.subr.mxu0 0.0
          %921 = vmatpush1.msra.mxu0 0.0
          %922 = vmatprep.subr.mxu0 0.0
          %923 = vmatpush1.msra.mxu0 0.0
          %924 = vmatprep.subr.mxu0 0.0
          %925 = vmatpush1.msra.mxu0 0.0
          %926 = vmatprep.subr.mxu0 0.0
          %927 = vmatpush1.msra.mxu0 0.0
          %928 = vmatprep.subr.mxu0 0.0
          %929 = vmatpush1.msra.mxu0 0.0
          %930 = vmatprep.subr.mxu0 0.0
          %931 = vmatpush1.msra.mxu0 0.0
          %932 = vmatprep.subr.mxu0 0.0
          %933 = vmatpush1.msra.mxu0 0.0
          %934 = vmatprep.subr.mxu0 0.0
          %935 = vmatpush1.msra.mxu0 0.0
          %936 = vmatprep.subr.mxu0 0.0
          %937 = vmatpush1.msra.mxu0 0.0
          %938 = vmatprep.subr.mxu0 0.0
          %939 = vmatpush1.msra.mxu0 0.0
          %940 = vmatprep.subr.mxu0 0.0
          %941 = vmatpush1.msra.mxu0 0.0
          %942 = vmatprep.mubr.f32.mxu0 0.0
          %943 = vmatmul.mubr.f32.gmra.mrb[0].mxu0 %v873
          %v944 = vpop.f32.mrb[0].mxu0
          %v945 = vadd.f32 %v870, %v944
          %v946 = vpop.f32.mrb[0].mxu0
          %947 = vmatprep.mubr.f32.mxu0 0.0
          %948 = vmatmul.mubr.f32.gmra.mrb[0].mxu0 %v876
          %v949 = vpop.f32.mrb[0].mxu0
          %v950 = vadd.f32 %v870, %v949
          %v951 = vpop.f32.mrb[0].mxu0
          %952 = vdwg.mxu0
          %s953 = scalar_lea.vmem %s347, %s822 [#allocation6]
          %954 = vst.msk [vmem:[%s953] sm:$0xff] %vm791, %v945
          %955 = vst.msk [vmem:[%s953 + $0x8] sm:$0xff] %vm791, %v950
          %v956 = vsel %vm791, %v945, -inf
          %957 = vmax.xlane.f32.xlu0 %v956
          %v958 = vpop.xlane.xlu0 %957
          %v959 = vsel %vm791, %v950, -inf
          %960 = vmax.xlane.f32.xlu0 %v959
          %v961 = vpop.xlane.xlu0 %960
          %v962 = vsub.f32 %v945, %v958
          %v963 = vsub.f32 %v950, %v961
          %v964 = vmul.f32 %v962, 1.442695
          %v965 = vpow.pop %v964
          %v966 = vmul.f32 %v963, 1.442695
          %v967 = vpow.pop %v966
          %v969 = vsel %vm791, 1.0, 0
          %v972 = vsel %vm791, %v965, 0
          %v975 = vsel %vm791, %v967, 0
          %977 = vmatprep.subr.mxu0 0.0
          %978 = vmatpush1.xpose.msra.mxu0 %v972
          %979 = vmatprep.subr.mxu0 0.0
          %980 = vmatpush1.xpose.msra.mxu0 %v975
          %981 = vmatprep.subr.mxu0 0.0
          %982 = vmatpush1.xpose.msra.mxu0 0.0
          %983 = vmatprep.subr.mxu0 0.0
          %984 = vmatpush1.xpose.msra.mxu0 0.0
          %985 = vmatprep.subr.mxu0 0.0
          %986 = vmatpush1.xpose.msra.mxu0 0.0
          %987 = vmatprep.subr.mxu0 0.0
          %988 = vmatpush1.xpose.msra.mxu0 0.0
          %989 = vmatprep.subr.mxu0 0.0
          %990 = vmatpush1.xpose.msra.mxu0 0.0
          %991 = vmatprep.subr.mxu0 0.0
          %992 = vmatpush1.xpose.msra.mxu0 0.0
          %993 = vmatprep.subr.mxu0 0.0
          %994 = vmatpush1.xpose.msra.mxu0 0.0
          %995 = vmatprep.subr.mxu0 0.0
          %996 = vmatpush1.xpose.msra.mxu0 0.0
          %997 = vmatprep.subr.mxu0 0.0
          %998 = vmatpush1.xpose.msra.mxu0 0.0
          %999 = vmatprep.subr.mxu0 0.0
          %1000 = vmatpush1.xpose.msra.mxu0 0.0
          %1001 = vmatprep.subr.mxu0 0.0
          %1002 = vmatpush1.xpose.msra.mxu0 0.0
          %1003 = vmatprep.subr.mxu0 0.0
          %1004 = vmatpush1.xpose.msra.mxu0 0.0
          %1005 = vmatprep.subr.mxu0 0.0
          %1006 = vmatpush1.xpose.msra.mxu0 0.0
          %1007 = vmatprep.subr.mxu0 0.0
          %1008 = vmatpush1.xpose.msra.mxu0 0.0
          %1009 = vmatprep.subr.mxu0 0.0
          %1010 = vmatpush1.xpose.msra.mxu0 0.0
          %1011 = vmatprep.subr.mxu0 0.0
          %1012 = vmatpush1.xpose.msra.mxu0 0.0
          %1013 = vmatprep.subr.mxu0 0.0
          %1014 = vmatpush1.xpose.msra.mxu0 0.0
          %1015 = vmatprep.subr.mxu0 0.0
          %1016 = vmatpush1.xpose.msra.mxu0 0.0
          %1017 = vmatprep.subr.mxu0 0.0
          %1018 = vmatpush1.xpose.msra.mxu0 0.0
          %1019 = vmatprep.subr.mxu0 0.0
          %1020 = vmatpush1.xpose.msra.mxu0 0.0
          %1021 = vmatprep.subr.mxu0 0.0
          %1022 = vmatpush1.xpose.msra.mxu0 0.0
          %1023 = vmatprep.subr.mxu0 0.0
          %1024 = vmatpush1.xpose.msra.mxu0 0.0
          %1025 = vmatprep.subr.mxu0 0.0
          %1026 = vmatpush1.xpose.msra.mxu0 0.0
          %1027 = vmatprep.subr.mxu0 0.0
          %1028 = vmatpush1.xpose.msra.mxu0 0.0
          %1029 = vmatprep.subr.mxu0 0.0
          %1030 = vmatpush1.xpose.msra.mxu0 0.0
          %1031 = vmatprep.subr.mxu0 0.0
          %1032 = vmatpush1.xpose.msra.mxu0 0.0
          %1033 = vmatprep.subr.mxu0 0.0
          %1034 = vmatpush1.xpose.msra.mxu0 0.0
          %1035 = vmatprep.subr.mxu0 0.0
          %1036 = vmatpush1.xpose.msra.mxu0 0.0
          %1037 = vmatprep.subr.mxu0 0.0
          %1038 = vmatpush1.xpose.msra.mxu0 0.0
          %1039 = vmatprep.subr.mxu0 0.0
          %1040 = vmatpush1.xpose.msra.mxu0 0.0
          %1041 = vmatprep.mubr.f32.mxu0 0.0
          %1042 = vmatmul.mubr.f32.gmra.mrb[0].mxu0 %v969
          %v1043 = vpop.f32.mrb[0].mxu0
          %v1044 = vadd.f32 0.0, %v1043
          %v1045 = vpop.f32.mrb[0].mxu0
          %1046 = vdwg.mxu0
          %v1048 = vsel %vm791, %v832, 0
          %v1051 = vsel %vm791, %v833, 0
          %1053 = vmatprep.subr.mxu0 0.0
          %1054 = vmatpush1.xpose.msra.mxu0 %v972
          %1055 = vmatprep.subr.mxu0 0.0
          %1056 = vmatpush1.xpose.msra.mxu0 %v975
          %1057 = vmatprep.subr.mxu0 0.0
          %1058 = vmatpush1.xpose.msra.mxu0 0.0
          %1059 = vmatprep.subr.mxu0 0.0
          %1060 = vmatpush1.xpose.msra.mxu0 0.0
          %1061 = vmatprep.subr.mxu0 0.0
          %1062 = vmatpush1.xpose.msra.mxu0 0.0
          %1063 = vmatprep.subr.mxu0 0.0
          %1064 = vmatpush1.xpose.msra.mxu0 0.0
          %1065 = vmatprep.subr.mxu0 0.0
          %1066 = vmatpush1.xpose.msra.mxu0 0.0
          %1067 = vmatprep.subr.mxu0 0.0
          %1068 = vmatpush1.xpose.msra.mxu0 0.0
          %1069 = vmatprep.subr.mxu0 0.0
          %1070 = vmatpush1.xpose.msra.mxu0 0.0
          %1071 = vmatprep.subr.mxu0 0.0
          %1072 = vmatpush1.xpose.msra.mxu0 0.0
          %1073 = vmatprep.subr.mxu0 0.0
          %1074 = vmatpush1.xpose.msra.mxu0 0.0
          %1075 = vmatprep.subr.mxu0 0.0
          %1076 = vmatpush1.xpose.msra.mxu0 0.0
          %1077 = vmatprep.subr.mxu0 0.0
          %1078 = vmatpush1.xpose.msra.mxu0 0.0
          %1079 = vmatprep.subr.mxu0 0.0
          %1080 = vmatpush1.xpose.msra.mxu0 0.0
          %1081 = vmatprep.subr.mxu0 0.0
          %1082 = vmatpush1.xpose.msra.mxu0 0.0
          %1083 = vmatprep.subr.mxu0 0.0
          %1084 = vmatpush1.xpose.msra.mxu0 0.0
          %1085 = vmatprep.subr.mxu0 0.0
          %1086 = vmatpush1.xpose.msra.mxu0 0.0
          %1087 = vmatprep.subr.mxu0 0.0
          %1088 = vmatpush1.xpose.msra.mxu0 0.0
          %1089 = vmatprep.subr.mxu0 0.0
          %1090 = vmatpush1.xpose.msra.mxu0 0.0
          %1091 = vmatprep.subr.mxu0 0.0
          %1092 = vmatpush1.xpose.msra.mxu0 0.0
          %1093 = vmatprep.subr.mxu0 0.0
          %1094 = vmatpush1.xpose.msra.mxu0 0.0
          %1095 = vmatprep.subr.mxu0 0.0
          %1096 = vmatpush1.xpose.msra.mxu0 0.0
          %1097 = vmatprep.subr.mxu0 0.0
          %1098 = vmatpush1.xpose.msra.mxu0 0.0
          %1099 = vmatprep.subr.mxu0 0.0
          %1100 = vmatpush1.xpose.msra.mxu0 0.0
          %1101 = vmatprep.subr.mxu0 0.0
          %1102 = vmatpush1.xpose.msra.mxu0 0.0
          %1103 = vmatprep.subr.mxu0 0.0
          %1104 = vmatpush1.xpose.msra.mxu0 0.0
          %1105 = vmatprep.subr.mxu0 0.0
          %1106 = vmatpush1.xpose.msra.mxu0 0.0
          %1107 = vmatprep.subr.mxu0 0.0
          %1108 = vmatpush1.xpose.msra.mxu0 0.0
          %1109 = vmatprep.subr.mxu0 0.0
          %1110 = vmatpush1.xpose.msra.mxu0 0.0
          %1111 = vmatprep.subr.mxu0 0.0
          %1112 = vmatpush1.xpose.msra.mxu0 0.0
          %1113 = vmatprep.subr.mxu0 0.0
          %1114 = vmatpush1.xpose.msra.mxu0 0.0
          %1115 = vmatprep.subr.mxu0 0.0
          %1116 = vmatpush1.xpose.msra.mxu0 0.0
          %1117 = vmatprep.mubr.f32.mxu0 0.0
          %1118 = vmatmul.mubr.f32.gmra.mrb[0].mxu0 %v1048
          %v1119 = vpop.f32.mrb[0].mxu0
          %v1120 = vadd.f32 0.0, %v1119
          %v1121 = vpop.f32.mrb[0].mxu0
          %1122 = vmatprep.mubr.f32.mxu0 0.0
          %1123 = vmatmul.mubr.f32.gmra.mrb[0].mxu0 %v1051
          %v1124 = vpop.f32.mrb[0].mxu0
          %v1125 = vadd.f32 0.0, %v1124
          %v1126 = vpop.f32.mrb[0].mxu0
          %1127 = vdwg.mxu0
          %v1128 = vrcp.pop %v1044
          %v1129 = vlaneseq
          %v1130 = vshrl.u32 %v1129, 7
          %v1131 = vsub.s32 0, %v1130
          %v1132 = vrot.slane %v1128, %v1131
          %v1133 = vmul.f32 %v1120, %v1132
          %v1134 = vmul.f32 %v1125, %v1132
          %s1135 = scalar_lea.vmem [#allocation3], %s822
          %1136 = vst.msk [vmem:[%s1135] sm:$0xff] %vm791, %v1133
          %1137 = vst.msk [vmem:[%s1135 + $0x8] sm:$0xff] %vm791, %v1134
        $region57: #{tpu_custom_call.1} parent=51 // loop_footer
          %s821 = sadd.s32 1, %s817
        $region58: #{tpu_custom_call.1} parent=51 // loop_footer_branch
          %816 = sbr.rel target = $region54
        $region59: #{tpu_custom_call.1} parent=51 // loop_exit
          _
        %v1138 = vld [vmem:[#allocation3] sm:$0xff]
        %v1139 = vld [vmem:[#allocation3 + $0x8] sm:$0xff]
        %s1140 = scalar_lea.vmem [#allocation3], 16
        %v1141 = vld [vmem:[%s1140] sm:$0xff]
        %v1142 = vld [vmem:[%s1140 + $0x8] sm:$0xff]
        %s1143 = scalar_lea.vmem [#allocation3], 32
        %v1144 = vld [vmem:[%s1143] sm:$0xff]
        %v1145 = vld [vmem:[%s1143 + $0x8] sm:$0xff]
        %s1146 = scalar_lea.vmem [#allocation3], 48
        %v1147 = vld [vmem:[%s1146] sm:$0xff]
        %v1148 = vld [vmem:[%s1146 + $0x8] sm:$0xff]
        %1149 = vxpose.xlu0.b32.start [1/16] %v1138, 128
        %1150 = vxpose.xlu0.b32.cont [2/16] %v1139, 128
        %1151 = vxpose.xlu0.b32.cont [3/16] %v1141, 128
        %1152 = vxpose.xlu0.b32.cont [4/16] %v1142, 128
        %1153 = vxpose.xlu0.b32.cont [5/16] %v1144, 128
        %1154 = vxpose.xlu0.b32.cont [6/16] %v1145, 128
        %1155 = vxpose.xlu0.b32.cont [7/16] %v1147, 128
        %1156 = vxpose.xlu0.b32.cont [8/16] %v1148, 128
        %1157 = vxpose.xlu0.b32.cont [9/16] 0.0, 128
        %1158 = vxpose.xlu0.b32.cont [10/16] 0.0, 128
        %1159 = vxpose.xlu0.b32.cont [11/16] 0.0, 128
        %1160 = vxpose.xlu0.b32.cont [12/16] 0.0, 128
        %1161 = vxpose.xlu0.b32.cont [13/16] 0.0, 128
        %1162 = vxpose.xlu0.b32.cont [14/16] 0.0, 128
        %1163 = vxpose.xlu0.b32.cont [15/16] 0.0, 128
        %1164 = vxpose.xlu0.b32.end [16/16] 0.0, 128
        %v1165 = vpop.trf.xlu0
        %v1166 = vpop.trf.xlu0
        %v1167 = vpop.trf.xlu0
        %v1168 = vpop.trf.xlu0
        %v1169 = vpop.trf.xlu0
        %v1170 = vpop.trf.xlu0
        %v1171 = vpop.trf.xlu0
        %v1172 = vpop.trf.xlu0
        %v1173 = vpop.trf.xlu0
        %v1174 = vpop.trf.xlu0
        %v1175 = vpop.trf.xlu0
        %v1176 = vpop.trf.xlu0
        %v1177 = vpop.trf.xlu0
        %v1178 = vpop.trf.xlu0
        %v1179 = vpop.trf.xlu0
        %v1180 = vpop.trf.xlu0
        %v1181 = vld [vmem:[%s4] sm:$0xff]
        %v1182 = vld [vmem:[%s4 + $0x8] sm:$0xff]
        %v1183 = vld [vmem:[%s4 + $0x10] sm:$0xff]
        %v1184 = vld [vmem:[%s4 + $0x18] sm:$0xff]
        %v1185 = vld [vmem:[%s4 + $0x20] sm:$0xff]
        %v1186 = vld [vmem:[%s4 + $0x28] sm:$0xff]
        %v1187 = vld [vmem:[%s4 + $0x30] sm:$0xff]
        %v1188 = vld [vmem:[%s4 + $0x38] sm:$0xff]
        %v1189 = vld [vmem:[%s5] sm:$0x1]
        %v1191 = vlaneseq
        %v1192 = vshrl.u32 %v1191, 7
        %v1193 = vsub.s32 0, %v1192
        %v1194 = vrot.slane %v1189, %v1193
        %v1197 = vsel %vm527, %v1165, 0
        %v1200 = vsel %vm527, %v1166, 0
        %v1203 = vsel %vm527, %v1181, 0
        %v1206 = vsel %vm527, %v1182, 0
        %v1209 = vsel %vm527, %v1183, 0
        %v1212 = vsel %vm527, %v1184, 0
        %v1215 = vsel %vm527, %v1185, 0
        %v1218 = vsel %vm527, %v1186, 0
        %v1221 = vsel %vm527, %v1187, 0
        %v1224 = vsel %vm527, %v1188, 0
        %1226 = vmatprep.subr.mxu0 0.0
        %1227 = vmatpush1.xpose.msra.mxu0 %v1203
        %1228 = vmatprep.subr.mxu0 0.0
        %1229 = vmatpush1.xpose.msra.mxu0 %v1206
        %1230 = vmatprep.subr.mxu0 0.0
        %1231 = vmatpush1.xpose.msra.mxu0 %v1209
        %1232 = vmatprep.subr.mxu0 0.0
        %1233 = vmatpush1.xpose.msra.mxu0 %v1212
        %1234 = vmatprep.subr.mxu0 0.0
        %1235 = vmatpush1.xpose.msra.mxu0 %v1215
        %1236 = vmatprep.subr.mxu0 0.0
        %1237 = vmatpush1.xpose.msra.mxu0 %v1218
        %1238 = vmatprep.subr.mxu0 0.0
        %1239 = vmatpush1.xpose.msra.mxu0 %v1221
        %1240 = vmatprep.subr.mxu0 0.0
        %1241 = vmatpush1.xpose.msra.mxu0 %v1224
        %1242 = vmatprep.subr.mxu0 0.0
        %1243 = vmatpush1.xpose.msra.mxu0 0.0
        %1244 = vmatprep.subr.mxu0 0.0
        %1245 = vmatpush1.xpose.msra.mxu0 0.0
        %1246 = vmatprep.subr.mxu0 0.0
        %1247 = vmatpush1.xpose.msra.mxu0 0.0
        %1248 = vmatprep.subr.mxu0 0.0
        %1249 = vmatpush1.xpose.msra.mxu0 0.0
        %1250 = vmatprep.subr.mxu0 0.0
        %1251 = vmatpush1.xpose.msra.mxu0 0.0
        %1252 = vmatprep.subr.mxu0 0.0
        %1253 = vmatpush1.xpose.msra.mxu0 0.0
        %1254 = vmatprep.subr.mxu0 0.0
        %1255 = vmatpush1.xpose.msra.mxu0 0.0
        %1256 = vmatprep.subr.mxu0 0.0
        %1257 = vmatpush1.xpose.msra.mxu0 0.0
        %1258 = vmatprep.subr.mxu0 0.0
        %1259 = vmatpush1.xpose.msra.mxu0 0.0
        %1260 = vmatprep.subr.mxu0 0.0
        %1261 = vmatpush1.xpose.msra.mxu0 0.0
        %1262 = vmatprep.subr.mxu0 0.0
        %1263 = vmatpush1.xpose.msra.mxu0 0.0
        %1264 = vmatprep.subr.mxu0 0.0
        %1265 = vmatpush1.xpose.msra.mxu0 0.0
        %1266 = vmatprep.subr.mxu0 0.0
        %1267 = vmatpush1.xpose.msra.mxu0 0.0
        %1268 = vmatprep.subr.mxu0 0.0
        %1269 = vmatpush1.xpose.msra.mxu0 0.0
        %1270 = vmatprep.subr.mxu0 0.0
        %1271 = vmatpush1.xpose.msra.mxu0 0.0
        %1272 = vmatprep.subr.mxu0 0.0
        %1273 = vmatpush1.xpose.msra.mxu0 0.0
        %1274 = vmatprep.subr.mxu0 0.0
        %1275 = vmatpush1.xpose.msra.mxu0 0.0
        %1276 = vmatprep.subr.mxu0 0.0
        %1277 = vmatpush1.xpose.msra.mxu0 0.0
        %1278 = vmatprep.subr.mxu0 0.0
        %1279 = vmatpush1.xpose.msra.mxu0 0.0
        %1280 = vmatprep.subr.mxu0 0.0
        %1281 = vmatpush1.xpose.msra.mxu0 0.0
        %1282 = vmatprep.subr.mxu0 0.0
        %1283 = vmatpush1.xpose.msra.mxu0 0.0
        %1284 = vmatprep.subr.mxu0 0.0
        %1285 = vmatpush1.xpose.msra.mxu0 0.0
        %1286 = vmatprep.subr.mxu0 0.0
        %1287 = vmatpush1.xpose.msra.mxu0 0.0
        %1288 = vmatprep.subr.mxu0 0.0
        %1289 = vmatpush1.xpose.msra.mxu0 0.0
        %1290 = vmatprep.mubr.f32.mxu0 0.0
        %1291 = vmatmul.mubr.f32.gmra.mrb[0].mxu0 %v1197
        %v1292 = vpop.f32.mrb[0].mxu0
        %v1293 = vadd.f32 %v1194, %v1292
        %v1294 = vpop.f32.mrb[0].mxu0
        %1295 = vmatprep.mubr.f32.mxu0 0.0
        %1296 = vmatmul.mubr.f32.gmra.mrb[0].mxu0 %v1200
        %v1297 = vpop.f32.mrb[0].mxu0
        %v1298 = vadd.f32 %v1194, %v1297
        %v1299 = vpop.f32.mrb[0].mxu0
        %1300 = vdwg.mxu0
        %v1301 = vadd.f32 %v1293, %v356
        %v1302 = vadd.f32 %v1298, %v357
        %v1303 = vsel %vm527, %v1301, 0.0
        %1304 = vadd.xlane.f32.xlu0 %v1303
        %v1305 = vpop.xlane.xlu0 %1304
        %v1306 = vsel %vm527, %v1302, 0.0
        %1307 = vadd.xlane.f32.xlu0 %v1306
        %v1308 = vpop.xlane.xlu0 %1307
        %v1309 = vrcp.pop 64.0
        %v1310 = vmul.f32 %v1305, %v1309
        %v1311 = vmul.f32 %v1308, %v1309
        %v1312 = vsub.f32 %v1301, %v1310
        %v1313 = vsub.f32 %v1302, %v1311
        %v1314 = vmul.f32 %v1312, %v1312
        %v1315 = vmul.f32 %v1313, %v1313
        %v1316 = vsel %vm527, %v1314, 0.0
        %1317 = vadd.xlane.f32.xlu0 %v1316
        %v1318 = vpop.xlane.xlu0 %1317
        %v1319 = vsel %vm527, %v1315, 0.0
        %1320 = vadd.xlane.f32.xlu0 %v1319
        %v1321 = vpop.xlane.xlu0 %1320
        %v1322 = vmul.f32 %v1318, %v1309
        %v1323 = vmul.f32 %v1321, %v1309
        %v1324 = vadd.f32 %v1322, 1e-12
        %v1325 = vadd.f32 %v1323, 1e-12
        %v1326 = vrsqrt.pop %v1324
        %v1327 = vrsqrt.pop %v1325
        %v1328 = vmul.f32 %v1312, %v1326
        %v1329 = vmul.f32 %v1313, %v1327
        %v1330 = vld [vmem:[%s6] sm:$0x1]
        %v1332 = vlaneseq
        %v1333 = vshrl.u32 %v1332, 7
        %v1334 = vsub.s32 0, %v1333
        %v1335 = vrot.slane %v1330, %v1334
        %v1337 = vmul.f32 %v1335, %v1328
        %v1338 = vmul.f32 %v1335, %v1329
        %v1339 = vld [vmem:[%s7] sm:$0x1]
        %v1341 = vlaneseq
        %v1342 = vshrl.u32 %v1341, 7
        %v1343 = vsub.s32 0, %v1342
        %v1344 = vrot.slane %v1339, %v1343
        %v1346 = vadd.f32 %v1337, %v1344
        %v1347 = vadd.f32 %v1338, %v1344
        %1348 = vst.msk [vmem:[%s340] sm:$0xff] %vm527, %v1346
        %1349 = vst.msk [vmem:[%s340 + $0x8] sm:$0xff] %vm527, %v1347
        %s1350 = sand.u32 %s213, 1
        %s1351 = scalar_lea.sflag [#allocation5], %s1350
        %s1352 = sand.u32 %s213, 1
        %s1353 = smul.addr %s1352, 16
        %s1354 = scalar_lea.vmem [#allocation4], %s1353
        %s1355 = sand.u32 %s239, 1
        %s1356 = scalar_lea.sflag [#allocation7], %s1355
        %s1357 = sand.u32 %s239, 1
        %s1358 = smul.addr %s1357, 64
        %s1359 = scalar_lea.vmem [#allocation6], %s1358
        // Predicated region
        $region60: #{tpu_custom_call.1} parent=51 // pred_check
          %p1360 = pneg %p223
        $region61: #{tpu_custom_call.1} parent=51 // pred_check_branch
          %1362 = sbr.rel (%p1360) target = $region63
        $region62: #{tpu_custom_call.1} parent=51 // pred_region
          %s1364 = ssub.s32 256, 256
          %1365 = vsyncadd %s1351, %s1364
          %s1366 = smul.addr %s27, 2
          %s1367 = smul.addr %s1366, 128
          %s1368 = scalar_lea.hbm %s8, %s1367
          %s1369 = sshll.u32 %s1354, 4
          %s1370 = int_to_ptr.vmem [resolvable:$true] %s1369
          %1375 = dma.vmem_to_hbm [thread:$0]  %s1370, 256, %s1368, %s1351, 128, 128, 8
        $region63: #{tpu_custom_call.1} parent=51 // pred_fallthru
          _
        // Predicated region
        $region64: #{tpu_custom_call.1} parent=51 // pred_check
          %p1376 = pneg %p249
        $region65: #{tpu_custom_call.1} parent=51 // pred_check_branch
          %1378 = sbr.rel (%p1376) target = $region67
        $region66: #{tpu_custom_call.1} parent=51 // pred_region
          %s1380 = ssub.s32 1024, 1024
          %1381 = vsyncadd %s1356, %s1380
          %s1382 = smul.addr %s27, 8
          %s1383 = smul.addr %s1382, 128
          %s1384 = scalar_lea.hbm %s9, %s1383
          %s1385 = sshll.u32 %s1359, 4
          %s1386 = int_to_ptr.vmem [resolvable:$true] %s1385
          %1391 = dma.vmem_to_hbm [thread:$0]  %s1386, 1024, %s1384, %s1356, 128, 128, 8
        $region67: #{tpu_custom_call.1} parent=51 // pred_fallthru
          _
      $region52: #{tpu_custom_call.1} parent=5 // pred_fallthru
        _
      %p1392 = scmp.le.s32.totalorder 2, %s22
      // Predicated region
      $region68: #{tpu_custom_call.1} parent=5 // pred_check
        %p1393 = pneg %p1392
      $region69: #{tpu_custom_call.1} parent=5 // pred_check_branch
        %1395 = sbr.rel (%p1393) target = $region71
      $region70: #{tpu_custom_call.1} parent=5 // pred_region
        %s1396 = ssub.s32 %s22, 2
        // Predicated region
        $region72: #{tpu_custom_call.1} parent=70 // pred_check
          %p1397 = pneg %p229
        $region73: #{tpu_custom_call.1} parent=70 // pred_check_branch
          %1399 = sbr.rel (%p1397) target = $region75
        $region74: #{tpu_custom_call.1} parent=70 // pred_region
          %s1400 = sand.u32 %s214, 1
          %s1401 = scalar_lea.sflag [#allocation5], %s1400
          %s1402 = sand.u32 %s214, 1
          %s1403 = smul.addr %s1402, 16
          %s1404 = scalar_lea.vmem [#allocation4], %s1403
          %1405 = dma.done %s1401, 256
        $region75: #{tpu_custom_call.1} parent=70 // pred_fallthru
          _
        // Predicated region
        $region76: #{tpu_custom_call.1} parent=70 // pred_check
          %p1406 = pneg %p255
        $region77: #{tpu_custom_call.1} parent=70 // pred_check_branch
          %1408 = sbr.rel (%p1406) target = $region79
        $region78: #{tpu_custom_call.1} parent=70 // pred_region
          %s1409 = sand.u32 %s240, 1
          %s1410 = scalar_lea.sflag [#allocation7], %s1409
          %s1411 = sand.u32 %s240, 1
          %s1412 = smul.addr %s1411, 64
          %s1413 = scalar_lea.vmem [#allocation6], %s1412
          %1414 = dma.done %s1410, 1024
        $region79: #{tpu_custom_call.1} parent=70 // pred_fallthru
          _
      $region71: #{tpu_custom_call.1} parent=5 // pred_fallthru
        _
    $region6: #{tpu_custom_call.1} parent=1 // loop_footer
      %s26 = sadd.s32 1, %s22
    $region7: #{tpu_custom_call.1} parent=1 // loop_footer_branch
      %21 = sbr.rel target = $region3
    $region8: #{tpu_custom_call.1} parent=1 // loop_exit
      _
    %1415 = vsyncpa [#allocation5], 1
    %s1416 = scalar_lea.sflag [#allocation5], 1
    %1417 = vsyncpa %s1416, 1
    %1418 = vsyncpa [#allocation7], 1
    %s1419 = scalar_lea.sflag [#allocation7], 1
    %1420 = vsyncpa %s1419, 1

</llo_original>
